<compile_context>
chip_gen: v7x
topology: tpu7x:2x2x1
jax: 0.10.0
libtpu: 0.0.40
codegen_flags: <defaults>
</compile_context>

<pallas_src>
import functools
import math

import jax
import jax.numpy as jnp
from jax import lax
from jax.experimental import pallas as pl
from jax.experimental.pallas import tpu as pltpu


# stand-in for torchreg `settings.get_ndims()`
NDIMS = 2


def _gaussian_taps(ksize: int) -> tuple:
    """Deterministic normalized 1-D Gaussian taps as Python floats (compile-time).

    Stand-in for the abstract `_2d_weights`: the 2-D filter is outer(g, g);
    g sums to 1, so the 2-D filter sums to 1 and is exactly separable.
    """
    sigma = 0.3 * ((ksize - 1) * 0.5 - 1.0) + 0.8
    g = [math.exp(-((i - (ksize - 1) / 2.0) ** 2) / (2.0 * sigma * sigma))
         for i in range(ksize)]
    s = sum(g)
    return tuple(v / s for v in g)


# --------------------------------------------------------------------------- #
# Kernel
# --------------------------------------------------------------------------- #
def _cov_filter_kernel(x_ref, o_ref, *, taps, H: int, W: int, p: int):
    """Fused separable depthwise filter on one (H, W, TB) batch-in-lanes block.

        out[h, w, b] = sum_{i,j} g[i] g[j] x[h+i-p, w+j-p, b]   (zero 'same' pad)

    Vertical and horizontal passes are fused per output row: the (W, TB) row
    intermediate stays in vregs.  Row shifts are leading-dim addressing (free);
    column shifts are XLU sublane rolls with the tap * boundary-mask folded
    into a (W, 1) constant, so boundary handling costs one VPU mul per term.
    """
    k = len(taps)
    f32 = jnp.float32

    def load_row(r):                                   # (W, TB) f32
        return x_ref[r].astype(f32)

    # ---- horizontal (W / sublane) pass, fully in vregs ---------------------
    # Hoisted once per grid step: (roll_shift, (W,1) tap-mask) per shifted term.
    h_terms = []
    if p > 0:
        wi = lax.broadcasted_iota(jnp.int32, (W, 1), 0)
        for d in range(1, p + 1):
            # term v[w+d]: valid where w + d < W
            gp = jnp.where(wi < W - d, f32(taps[p + d]), f32(0.0))
            # term v[w-d]: valid where w - d >= 0
            gm = jnp.where(wi >= d, f32(taps[p - d]), f32(0.0))
            h_terms.append(((W - d) % W, gp))          # roll(v, W-d)[w] = v[w+d]
            h_terms.append((d % W, gm))                # roll(v, d)[w]   = v[w-d]

    def hpass(v):                                      # v: (W, TB) f32
        out = f32(taps[p]) * v
        for shift, gmask in h_terms:                   # roll = XLU (free slot),
            out = out + pltpu.roll(v, shift, axis=0) * gmask   # mask*tap = 1 VPU mul
        return out

    # ---- vertical (H / leading-dim) pass -----------------------------------
    def vrow_interior(h):                              # all taps in range; folded pairs
        acc = f32(taps[p]) * load_row(h)
        for d in range(1, p + 1):                      # symmetric taps: 1 mul per pair
            acc = acc + f32(taps[p + d]) * (load_row(h - d) + load_row(h + d))
        return acc

    def vrow_edge(h):                                  # static h near a border
        acc = None
        for i in range(k):
            r = h + i - p
            if 0 <= r < H:
                t = f32(taps[i]) * load_row(r)
                acc = t if acc is None else acc + t
        return acc

    def emit(h, vrow):
        o_ref[h] = hpass(vrow).astype(o_ref.dtype)     # one aligned row store

    lo, hi = min(p, H), max(p, H - p)                  # interior output rows [lo, hi)
    for h in range(lo):                                # top border rows (static)
        emit(h, vrow_edge(h))
    for h in range(hi, H):                             # bottom border rows (static)
        emit(h, vrow_edge(h))
    if hi > lo:
        if H <= 32:
            # Small spatial extent: full static unroll (cleanest codegen).
            for h in range(lo, hi):
                emit(h, vrow_interior(h))
        else:
            # Larger H: keep code size bounded with an in-kernel loop.
            def body(h, carry):
                emit(h, vrow_interior(h))
                return carry
            lax.fori_loop(lo, hi, body, 0)


# --------------------------------------------------------------------------- #
# Tiling / VMEM budget helpers
# --------------------------------------------------------------------------- #
def _round_up(x: int, m: int) -> int:
    return ((x + m - 1) // m) * m


def _vmem_budget_bytes():
    """Generation-aware (budget for block sizing, scoped vmem limit)."""
    cap = None
    try:
        cap = getattr(pltpu.get_tpu_info(), "vmem_capacity_bytes", None)
    except Exception:
        cap = None
    if not cap:
        cap = 64 * 1024 * 1024                 # conservative: v7x per-TensorCore VMEM
    cap = int(cap)
    budget = cap // 2                          # 32 MiB on v7x, 64 MiB on v5e/v6e
    limit = min((cap * 3) // 4, 100 * 1024 * 1024)
    return budget, int(limit)


def _choose_batch_tile(H: int, W: int, B: int, itemsize: int, budget_bytes: int) -> int:
    """Lane tile TB for the (H, W, B) batch-in-lanes layout."""
    if B <= 128:
        # Block lane extent == full array dim (legal, no HBM padding pass).
        return B
    per_lane = 4 * H * W * itemsize            # double-buffered input + output blocks
    tb = max(128, (budget_bytes // per_lane) // 128 * 128)
    # Keep the handful of (W, TB) f32 row arrays live in the kernel spill-free.
    row_cap = max(128, ((96 * 1024) // (4 * W)) // 128 * 128)
    tb = min(tb, row_cap, 4096)
    # Never larger than the whole-128 part of B: only the *final* block may be ragged.
    tb = min(tb, (B // 128) * 128)
    tb = max(tb, 128)
    # With plenty of work, prefer >= 2 grid steps so a 2-TensorCore part (v7x)
    # can shard the parallel lane axis; harmless on single-TC v5e/v6e.
    if tb >= 1024 and pl.cdiv(B, tb) < 2:
        tb = max(512, ((tb // 2) // 128) * 128)
    return tb


# --------------------------------------------------------------------------- #
# Functional entry point on (H, W, B) data
# --------------------------------------------------------------------------- #
def cov_filter_hwb(xb: jnp.ndarray, taps, lane_tile=None) -> jnp.ndarray:
    """Depthwise separable k x k filter ('same' zero padding) on (H, W, B) data.

    B = N*C*D rides in the lane dimension; the filter never mixes lanes.
    """
    H, W, B = xb.shape
    k = len(taps)
    p = k // 2
    itemsize = jnp.dtype(xb.dtype).itemsize

    budget, vmem_limit = _vmem_budget_bytes()
    if lane_tile is not None:
        TB = int(lane_tile)
        assert TB == B or (TB % 128 == 0 and TB <= B), "illegal lane_tile override"
    else:
        TB = _choose_batch_tile(H, W, B, itemsize, budget)
    nb = pl.cdiv(B, TB)

    kern = functools.partial(_cov_filter_kernel, taps=tuple(taps), H=H, W=W, p=p)
    return pl.pallas_call(
        kern,
        out_shape=jax.ShapeDtypeStruct((H, W, B), xb.dtype),
        grid=(nb,),
        in_specs=[pl.BlockSpec((H, W, TB), lambda b: (0, 0, b))],
        out_specs=pl.BlockSpec((H, W, TB), lambda b: (0, 0, b)),
        compiler_params=pltpu.CompilerParams(
            dimension_semantics=("parallel",),
            vmem_limit_bytes=vmem_limit,
        ),
        cost_estimate=pl.CostEstimate(
            flops=(4 * k - 2) * H * W * B,
            transcendentals=0,
            bytes_accessed=2 * H * W * B * itemsize,
        ),
    )(xb)


# --------------------------------------------------------------------------- #
# Module wrapper
# --------------------------------------------------------------------------- #
class CovFilterLayer:
    """JAX/Pallas port of torchreg CovFilterLayer (fixed-weight depthwise smoothing conv)."""

    def __init__(self, ksize: int, channels: int = 1):
        self.ndims = NDIMS
        if ksize % 2 == 0:
            ksize += 1
        self.ksize = ksize
        self.channels = channels
        if self.ndims == 2:
            # Stand-in for the abstract _2d_weights: separable normalized Gaussian.
            # TODO(synk): a non-separable subclass filter would need a k*k-tap fallback kernel.
            self.taps = _gaussian_taps(self.ksize)
            g = jnp.asarray(self.taps, dtype=jnp.float32)
            self.weights = jnp.outer(g, g)                       # (k, k), sums to 1
        elif self.ndims == 3:
            # TODO(synk): ndims==3 path (full k^3 depthwise Conv3d) not implemented in Pallas here.
            raise NotImplementedError("3D CovFilterLayer path not implemented")

    def __call__(self, x: jnp.ndarray) -> jnp.ndarray:
        # x: (N, C, H, W, D).  Depthwise (groups=channels) conv with the same fixed
        # (k, k, 1) filter on every channel (matches the module's shared weight).
        # TODO(synk): when this layer is applied repeatedly, keep activations in the
        # (H, W, B) lane-dense layout across calls and use cov_filter_hwb directly to
        # avoid the relayout transposes below (they are extra HBM passes).
        N, C, H, W, D = x.shape
        xb = jnp.transpose(x, (2, 3, 0, 1, 4)).reshape(H, W, N * C * D)
        yb = cov_filter_hwb(xb, self.taps)
        return jnp.transpose(yb.reshape(H, W, N, C, D), (2, 3, 0, 1, 4))


# --------------------------------------------------------------------------- #
# Pure-JAX reference and self-test
# --------------------------------------------------------------------------- #
def _reference_2d(x: jnp.ndarray, weights: jnp.ndarray) -> jnp.ndarray:
    """Per-(N,C,D) slice 2-D cross-correlation with 'same' zero padding."""
    N, C, H, W, D = x.shape
    k = weights.shape[0]
    p = k // 2
    xb = jnp.transpose(x, (0, 1, 4, 2, 3)).reshape(N * C * D, 1, H, W).astype(jnp.float32)
    out = lax.conv_general_dilated(
        xb,
        weights[None, None].astype(jnp.float32),
        window_strides=(1, 1),
        padding=((p, p), (p, p)),
        dimension_numbers=("NCHW", "OIHW", "NCHW"),
    )
    out = out.reshape(N, C, D, H, W)
    return jnp.transpose(out, (0, 1, 3, 4, 2)).astype(x.dtype)


if __name__ == "__main__":
    key = jax.random.PRNGKey(0)
    k1, k2 = jax.random.split(key)

    # Conv3d input (N, C, dim0, dim1, dim2); torchreg 2D images carry a trailing size-1 dim.
    x = jax.random.normal(k1, (2, 4, 16, 16, 1), dtype=jnp.float32)
    for ksize in (3, 5):
        layer = CovFilterLayer(ksize=ksize, channels=4)
        y = jax.block_until_ready(layer(x))
        y_ref = _reference_2d(x, layer.weights)
        assert y.shape == x.shape, (y.shape, x.shape)
        assert jnp.allclose(y, y_ref, atol=1e-5, rtol=1e-5), f"mismatch (k={ksize})"

    # Deeper trailing dim: B = N*C*D = 256 lanes (single 128-multiple lane block).
    x2 = jax.random.normal(k2, (2, 4, 16, 16, 32), dtype=jnp.float32)
    layer3 = CovFilterLayer(ksize=3, channels=4)
    y2 = jax.block_until_ready(layer3(x2))
    y2_ref = _reference_2d(x2, layer3.weights)
    assert jnp.allclose(y2, y2_ref, atol=1e-5, rtol=1e-5), "mismatch (deep D, auto tile)"

    # Same data through the functional (H, W, B) entry point with a forced
    # 128-lane tile -> a two-step grid exercising the index_map path.
    xb2 = jnp.transpose(x2, (2, 3, 0, 1, 4)).reshape(16, 16, 2 * 4 * 32)
    yb2 = cov_filter_hwb(xb2, layer3.taps, lane_tile=128)
    y2b = jnp.transpose(yb2.reshape(16, 16, 2, 4, 32), (2, 3, 0, 1, 4))
    y2b = jax.block_until_ready(y2b)
    assert jnp.allclose(y2b, y2_ref, atol=1e-5, rtol=1e-5), "mismatch (deep D, 2-block grid)"

    print("KERNEL_OK")
</pallas_src>

<mosaic_0001>
module attributes {stable_mosaic.version = 11 : i64} {
  func.func @_cov_filter_kernel(%arg0: i32, %arg1: memref<16x16x8xf32, #tpu.memory_space<vmem>>, %arg2: memref<16x16x8xf32, #tpu.memory_space<vmem>>) attributes {dimension_semantics = [#tpu.dimension_semantics<parallel>], iteration_bounds = array<i64: 1>, scalar_prefetch = 0 : i64, scratch_operands = 0 : i64, tpu.core_type = #tpu.core_type<tc>, window_params = [{transform_indices = @transform_0, window_bounds = array<i64: 16, 16, 8>}, {transform_indices = @transform_1, window_bounds = array<i64: 16, 16, 8>}]} {
    %0 = tpu.iota {dimensions = array<i32: 0>} : vector<16x1xi32>
    %c15_i32 = arith.constant 15 : i32
    %1 = vector.broadcast %c15_i32 : i32 to vector<16x1xi32>
    %2 = arith.cmpi slt, %0, %1 : vector<16x1xi32>
    %cst = arith.constant 0.238994271 : f32
    %cst_0 = arith.constant 0.000000e+00 : f32
    %3 = vector.broadcast %cst : f32 to vector<16x1xf32>
    %4 = vector.broadcast %cst_0 : f32 to vector<16x1xf32>
    %5 = arith.select %2, %3, %4 : vector<16x1xi1>, vector<16x1xf32>
    %c1_i32 = arith.constant 1 : i32
    %6 = vector.broadcast %c1_i32 : i32 to vector<16x1xi32>
    %7 = arith.cmpi sge, %0, %6 : vector<16x1xi32>
    %cst_1 = arith.constant 0.238994271 : f32
    %cst_2 = arith.constant 0.000000e+00 : f32
    %8 = vector.broadcast %cst_1 : f32 to vector<16x1xf32>
    %9 = vector.broadcast %cst_2 : f32 to vector<16x1xf32>
    %10 = arith.select %7, %8, %9 : vector<16x1xi1>, vector<16x1xf32>
    %c0 = arith.constant 0 : index
    %c0_3 = arith.constant 0 : index
    %c0_4 = arith.constant 0 : index
    %11 = vector.load %arg1[%c0, %c0_3, %c0_4] : memref<16x16x8xf32, #tpu.memory_space<vmem>>, vector<1x16x8xf32>
    %12 = vector.shape_cast %11 : vector<1x16x8xf32> to vector<16x8xf32>
    %cst_5 = arith.constant 0.522011459 : f32
    %13 = vector.broadcast %cst_5 : f32 to vector<16x8xf32>
    %14 = arith.mulf %13, %12 : vector<16x8xf32>
    %c1 = arith.constant 1 : index
    %c0_6 = arith.constant 0 : index
    %c0_7 = arith.constant 0 : index
    %15 = vector.load %arg1[%c1, %c0_6, %c0_7] : memref<16x16x8xf32, #tpu.memory_space<vmem>>, vector<1x16x8xf32>
    %16 = vector.shape_cast %15 : vector<1x16x8xf32> to vector<16x8xf32>
    %cst_8 = arith.constant 0.238994271 : f32
    %17 = vector.broadcast %cst_8 : f32 to vector<16x8xf32>
    %18 = arith.mulf %17, %16 : vector<16x8xf32>
    %19 = arith.addf %14, %18 : vector<16x8xf32>
    %cst_9 = arith.constant 0.522011459 : f32
    %20 = vector.broadcast %cst_9 : f32 to vector<16x8xf32>
    %21 = arith.mulf %20, %19 : vector<16x8xf32>
    %c15_i32_10 = arith.constant 15 : i32
    %22 = tpu.dynamic_rotate %19 by %c15_i32_10 dim 0 : vector<16x8xf32>, i32 -> vector<16x8xf32>
    %23 = vector.broadcast %5 : vector<16x1xf32> to vector<16x8xf32>
    %24 = arith.mulf %22, %23 : vector<16x8xf32>
    %25 = arith.addf %21, %24 : vector<16x8xf32>
    %c1_i32_11 = arith.constant 1 : i32
    %26 = tpu.dynamic_rotate %19 by %c1_i32_11 dim 0 : vector<16x8xf32>, i32 -> vector<16x8xf32>
    %27 = vector.broadcast %10 : vector<16x1xf32> to vector<16x8xf32>
    %28 = arith.mulf %26, %27 : vector<16x8xf32>
    %29 = arith.addf %25, %28 : vector<16x8xf32>
    %c0_12 = arith.constant 0 : index
    %c0_13 = arith.constant 0 : index
    %c0_14 = arith.constant 0 : index
    %30 = vector.load %arg2[%c0_12, %c0_13, %c0_14] : memref<16x16x8xf32, #tpu.memory_space<vmem>>, vector<1x16x8xf32>
    %31 = vector.shape_cast %30 : vector<1x16x8xf32> to vector<16x8xf32>
    %32 = vector.shape_cast %29 : vector<16x8xf32> to vector<1x16x8xf32>
    tpu.vector_store %arg2[%c0_12, %c0_13, %c0_14], %32 {strides = array<i32>} : memref<16x16x8xf32, #tpu.memory_space<vmem>>, vector<1x16x8xf32>,
    %c14 = arith.constant 14 : index
    %c0_15 = arith.constant 0 : index
    %c0_16 = arith.constant 0 : index
    %33 = vector.load %arg1[%c14, %c0_15, %c0_16] : memref<16x16x8xf32, #tpu.memory_space<vmem>>, vector<1x16x8xf32>
    %34 = vector.shape_cast %33 : vector<1x16x8xf32> to vector<16x8xf32>
    %cst_17 = arith.constant 0.238994271 : f32
    %35 = vector.broadcast %cst_17 : f32 to vector<16x8xf32>
    %36 = arith.mulf %35, %34 : vector<16x8xf32>
    %c15 = arith.constant 15 : index
    %c0_18 = arith.constant 0 : index
    %c0_19 = arith.constant 0 : index
    %37 = vector.load %arg1[%c15, %c0_18, %c0_19] : memref<16x16x8xf32, #tpu.memory_space<vmem>>, vector<1x16x8xf32>
    %38 = vector.shape_cast %37 : vector<1x16x8xf32> to vector<16x8xf32>
    %cst_20 = arith.constant 0.522011459 : f32
    %39 = vector.broadcast %cst_20 : f32 to vector<16x8xf32>
    %40 = arith.mulf %39, %38 : vector<16x8xf32>
    %41 = arith.addf %36, %40 : vector<16x8xf32>
    %cst_21 = arith.constant 0.522011459 : f32
    %42 = vector.broadcast %cst_21 : f32 to vector<16x8xf32>
    %43 = arith.mulf %42, %41 : vector<16x8xf32>
    %c15_i32_22 = arith.constant 15 : i32
    %44 = tpu.dynamic_rotate %41 by %c15_i32_22 dim 0 : vector<16x8xf32>, i32 -> vector<16x8xf32>
    %45 = vector.broadcast %5 : vector<16x1xf32> to vector<16x8xf32>
    %46 = arith.mulf %44, %45 : vector<16x8xf32>
    %47 = arith.addf %43, %46 : vector<16x8xf32>
    %c1_i32_23 = arith.constant 1 : i32
    %48 = tpu.dynamic_rotate %41 by %c1_i32_23 dim 0 : vector<16x8xf32>, i32 -> vector<16x8xf32>
    %49 = vector.broadcast %10 : vector<16x1xf32> to vector<16x8xf32>
    %50 = arith.mulf %48, %49 : vector<16x8xf32>
    %51 = arith.addf %47, %50 : vector<16x8xf32>
    %c15_24 = arith.constant 15 : index
    %c0_25 = arith.constant 0 : index
    %c0_26 = arith.constant 0 : index
    %52 = vector.load %arg2[%c15_24, %c0_25, %c0_26] : memref<16x16x8xf32, #tpu.memory_space<vmem>>, vector<1x16x8xf32>
    %53 = vector.shape_cast %52 : vector<1x16x8xf32> to vector<16x8xf32>
    %54 = vector.shape_cast %51 : vector<16x8xf32> to vector<1x16x8xf32>
    tpu.vector_store %arg2[%c15_24, %c0_25, %c0_26], %54 {strides = array<i32>} : memref<16x16x8xf32, #tpu.memory_space<vmem>>, vector<1x16x8xf32>,
    %c1_27 = arith.constant 1 : index
    %c0_28 = arith.constant 0 : index
    %c0_29 = arith.constant 0 : index
    %55 = vector.load %arg1[%c1_27, %c0_28, %c0_29] : memref<16x16x8xf32, #tpu.memory_space<vmem>>, vector<1x16x8xf32>
    %56 = vector.shape_cast %55 : vector<1x16x8xf32> to vector<16x8xf32>
    %cst_30 = arith.constant 0.522011459 : f32
    %57 = vector.broadcast %cst_30 : f32 to vector<16x8xf32>
    %58 = arith.mulf %57, %56 : vector<16x8xf32>
    %c0_31 = arith.constant 0 : index
    %c0_32 = arith.constant 0 : index
    %c0_33 = arith.constant 0 : index
    %59 = vector.load %arg1[%c0_31, %c0_32, %c0_33] : memref<16x16x8xf32, #tpu.memory_space<vmem>>, vector<1x16x8xf32>
    %60 = vector.shape_cast %59 : vector<1x16x8xf32> to vector<16x8xf32>
    %c2 = arith.constant 2 : index
    %c0_34 = arith.constant 0 : index
    %c0_35 = arith.constant 0 : index
    %61 = vector.load %arg1[%c2, %c0_34, %c0_35] : memref<16x16x8xf32, #tpu.memory_space<vmem>>, vector<1x16x8xf32>
    %62 = vector.shape_cast %61 : vector<1x16x8xf32> to vector<16x8xf32>
    %63 = arith.addf %60, %62 : vector<16x8xf32>
    %cst_36 = arith.constant 0.238994271 : f32
    %64 = vector.broadcast %cst_36 : f32 to vector<16x8xf32>
    %65 = arith.mulf %64, %63 : vector<16x8xf32>
    %66 = arith.addf %58, %65 : vector<16x8xf32>
    %cst_37 = arith.constant 0.522011459 : f32
    %67 = vector.broadcast %cst_37 : f32 to vector<16x8xf32>
    %68 = arith.mulf %67, %66 : vector<16x8xf32>
    %c15_i32_38 = arith.constant 15 : i32
    %69 = tpu.dynamic_rotate %66 by %c15_i32_38 dim 0 : vector<16x8xf32>, i32 -> vector<16x8xf32>
    %70 = vector.broadcast %5 : vector<16x1xf32> to vector<16x8xf32>
    %71 = arith.mulf %69, %70 : vector<16x8xf32>
    %72 = arith.addf %68, %71 : vector<16x8xf32>
    %c1_i32_39 = arith.constant 1 : i32
    %73 = tpu.dynamic_rotate %66 by %c1_i32_39 dim 0 : vector<16x8xf32>, i32 -> vector<16x8xf32>
    %74 = vector.broadcast %10 : vector<16x1xf32> to vector<16x8xf32>
    %75 = arith.mulf %73, %74 : vector<16x8xf32>
    %76 = arith.addf %72, %75 : vector<16x8xf32>
    %c1_40 = arith.constant 1 : index
    %c0_41 = arith.constant 0 : index
    %c0_42 = arith.constant 0 : index
    %77 = vector.load %arg2[%c1_40, %c0_41, %c0_42] : memref<16x16x8xf32, #tpu.memory_space<vmem>>, vector<1x16x8xf32>
    %78 = vector.shape_cast %77 : vector<1x16x8xf32> to vector<16x8xf32>
    %79 = vector.shape_cast %76 : vector<16x8xf32> to vector<1x16x8xf32>
    tpu.vector_store %arg2[%c1_40, %c0_41, %c0_42], %79 {strides = array<i32>} : memref<16x16x8xf32, #tpu.memory_space<vmem>>, vector<1x16x8xf32>,
    %c2_43 = arith.constant 2 : index
    %c0_44 = arith.constant 0 : index
    %c0_45 = arith.constant 0 : index
    %80 = vector.load %arg1[%c2_43, %c0_44, %c0_45] : memref<16x16x8xf32, #tpu.memory_space<vmem>>, vector<1x16x8xf32>
    %81 = vector.shape_cast %80 : vector<1x16x8xf32> to vector<16x8xf32>
    %cst_46 = arith.constant 0.522011459 : f32
    %82 = vector.broadcast %cst_46 : f32 to vector<16x8xf32>
    %83 = arith.mulf %82, %81 : vector<16x8xf32>
    %c1_47 = arith.constant 1 : index
    %c0_48 = arith.constant 0 : index
    %c0_49 = arith.constant 0 : index
    %84 = vector.load %arg1[%c1_47, %c0_48, %c0_49] : memref<16x16x8xf32, #tpu.memory_space<vmem>>, vector<1x16x8xf32>
    %85 = vector.shape_cast %84 : vector<1x16x8xf32> to vector<16x8xf32>
    %c3 = arith.constant 3 : index
    %c0_50 = arith.constant 0 : index
    %c0_51 = arith.constant 0 : index
    %86 = vector.load %arg1[%c3, %c0_50, %c0_51] : memref<16x16x8xf32, #tpu.memory_space<vmem>>, vector<1x16x8xf32>
    %87 = vector.shape_cast %86 : vector<1x16x8xf32> to vector<16x8xf32>
    %88 = arith.addf %85, %87 : vector<16x8xf32>
    %cst_52 = arith.constant 0.238994271 : f32
    %89 = vector.broadcast %cst_52 : f32 to vector<16x8xf32>
    %90 = arith.mulf %89, %88 : vector<16x8xf32>
    %91 = arith.addf %83, %90 : vector<16x8xf32>
    %cst_53 = arith.constant 0.522011459 : f32
    %92 = vector.broadcast %cst_53 : f32 to vector<16x8xf32>
    %93 = arith.mulf %92, %91 : vector<16x8xf32>
    %c15_i32_54 = arith.constant 15 : i32
    %94 = tpu.dynamic_rotate %91 by %c15_i32_54 dim 0 : vector<16x8xf32>, i32 -> vector<16x8xf32>
    %95 = vector.broadcast %5 : vector<16x1xf32> to vector<16x8xf32>
    %96 = arith.mulf %94, %95 : vector<16x8xf32>
    %97 = arith.addf %93, %96 : vector<16x8xf32>
    %c1_i32_55 = arith.constant 1 : i32
    %98 = tpu.dynamic_rotate %91 by %c1_i32_55 dim 0 : vector<16x8xf32>, i32 -> vector<16x8xf32>
    %99 = vector.broadcast %10 : vector<16x1xf32> to vector<16x8xf32>
    %100 = arith.mulf %98, %99 : vector<16x8xf32>
    %101 = arith.addf %97, %100 : vector<16x8xf32>
    %c2_56 = arith.constant 2 : index
    %c0_57 = arith.constant 0 : index
    %c0_58 = arith.constant 0 : index
    %102 = vector.load %arg2[%c2_56, %c0_57, %c0_58] : memref<16x16x8xf32, #tpu.memory_space<vmem>>, vector<1x16x8xf32>
    %103 = vector.shape_cast %102 : vector<1x16x8xf32> to vector<16x8xf32>
    %104 = vector.shape_cast %101 : vector<16x8xf32> to vector<1x16x8xf32>
    tpu.vector_store %arg2[%c2_56, %c0_57, %c0_58], %104 {strides = array<i32>} : memref<16x16x8xf32, #tpu.memory_space<vmem>>, vector<1x16x8xf32>,
    %c3_59 = arith.constant 3 : index
    %c0_60 = arith.constant 0 : index
    %c0_61 = arith.constant 0 : index
    %105 = vector.load %arg1[%c3_59, %c0_60, %c0_61] : memref<16x16x8xf32, #tpu.memory_space<vmem>>, vector<1x16x8xf32>
    %106 = vector.shape_cast %105 : vector<1x16x8xf32> to vector<16x8xf32>
    %cst_62 = arith.constant 0.522011459 : f32
    %107 = vector.broadcast %cst_62 : f32 to vector<16x8xf32>
    %108 = arith.mulf %107, %106 : vector<16x8xf32>
    %c2_63 = arith.constant 2 : index
    %c0_64 = arith.constant 0 : index
    %c0_65 = arith.constant 0 : index
    %109 = vector.load %arg1[%c2_63, %c0_64, %c0_65] : memref<16x16x8xf32, #tpu.memory_space<vmem>>, vector<1x16x8xf32>
    %110 = vector.shape_cast %109 : vector<1x16x8xf32> to vector<16x8xf32>
    %c4 = arith.constant 4 : index
    %c0_66 = arith.constant 0 : index
    %c0_67 = arith.constant 0 : index
    %111 = vector.load %arg1[%c4, %c0_66, %c0_67] : memref<16x16x8xf32, #tpu.memory_space<vmem>>, vector<1x16x8xf32>
    %112 = vector.shape_cast %111 : vector<1x16x8xf32> to vector<16x8xf32>
    %113 = arith.addf %110, %112 : vector<16x8xf32>
    %cst_68 = arith.constant 0.238994271 : f32
    %114 = vector.broadcast %cst_68 : f32 to vector<16x8xf32>
    %115 = arith.mulf %114, %113 : vector<16x8xf32>
    %116 = arith.addf %108, %115 : vector<16x8xf32>
    %cst_69 = arith.constant 0.522011459 : f32
    %117 = vector.broadcast %cst_69 : f32 to vector<16x8xf32>
    %118 = arith.mulf %117, %116 : vector<16x8xf32>
    %c15_i32_70 = arith.constant 15 : i32
    %119 = tpu.dynamic_rotate %116 by %c15_i32_70 dim 0 : vector<16x8xf32>, i32 -> vector<16x8xf32>
    %120 = vector.broadcast %5 : vector<16x1xf32> to vector<16x8xf32>
    %121 = arith.mulf %119, %120 : vector<16x8xf32>
    %122 = arith.addf %118, %121 : vector<16x8xf32>
    %c1_i32_71 = arith.constant 1 : i32
    %123 = tpu.dynamic_rotate %116 by %c1_i32_71 dim 0 : vector<16x8xf32>, i32 -> vector<16x8xf32>
    %124 = vector.broadcast %10 : vector<16x1xf32> to vector<16x8xf32>
    %125 = arith.mulf %123, %124 : vector<16x8xf32>
    %126 = arith.addf %122, %125 : vector<16x8xf32>
    %c3_72 = arith.constant 3 : index
    %c0_73 = arith.constant 0 : index
    %c0_74 = arith.constant 0 : index
    %127 = vector.load %arg2[%c3_72, %c0_73, %c0_74] : memref<16x16x8xf32, #tpu.memory_space<vmem>>, vector<1x16x8xf32>
    %128 = vector.shape_cast %127 : vector<1x16x8xf32> to vector<16x8xf32>
    %129 = vector.shape_cast %126 : vector<16x8xf32> to vector<1x16x8xf32>
    tpu.vector_store %arg2[%c3_72, %c0_73, %c0_74], %129 {strides = array<i32>} : memref<16x16x8xf32, #tpu.memory_space<vmem>>, vector<1x16x8xf32>,
    %c4_75 = arith.constant 4 : index
    %c0_76 = arith.constant 0 : index
    %c0_77 = arith.constant 0 : index
    %130 = vector.load %arg1[%c4_75, %c0_76, %c0_77] : memref<16x16x8xf32, #tpu.memory_space<vmem>>, vector<1x16x8xf32>
    %131 = vector.shape_cast %130 : vector<1x16x8xf32> to vector<16x8xf32>
    %cst_78 = arith.constant 0.522011459 : f32
    %132 = vector.broadcast %cst_78 : f32 to vector<16x8xf32>
    %133 = arith.mulf %132, %131 : vector<16x8xf32>
    %c3_79 = arith.constant 3 : index
    %c0_80 = arith.constant 0 : index
    %c0_81 = arith.constant 0 : index
    %134 = vector.load %arg1[%c3_79, %c0_80, %c0_81] : memref<16x16x8xf32, #tpu.memory_space<vmem>>, vector<1x16x8xf32>
    %135 = vector.shape_cast %134 : vector<1x16x8xf32> to vector<16x8xf32>
    %c5 = arith.constant 5 : index
    %c0_82 = arith.constant 0 : index
    %c0_83 = arith.constant 0 : index
    %136 = vector.load %arg1[%c5, %c0_82, %c0_83] : memref<16x16x8xf32, #tpu.memory_space<vmem>>, vector<1x16x8xf32>
    %137 = vector.shape_cast %136 : vector<1x16x8xf32> to vector<16x8xf32>
    %138 = arith.addf %135, %137 : vector<16x8xf32>
    %cst_84 = arith.constant 0.238994271 : f32
    %139 = vector.broadcast %cst_84 : f32 to vector<16x8xf32>
    %140 = arith.mulf %139, %138 : vector<16x8xf32>
    %141 = arith.addf %133, %140 : vector<16x8xf32>
    %cst_85 = arith.constant 0.522011459 : f32
    %142 = vector.broadcast %cst_85 : f32 to vector<16x8xf32>
    %143 = arith.mulf %142, %141 : vector<16x8xf32>
    %c15_i32_86 = arith.constant 15 : i32
    %144 = tpu.dynamic_rotate %141 by %c15_i32_86 dim 0 : vector<16x8xf32>, i32 -> vector<16x8xf32>
    %145 = vector.broadcast %5 : vector<16x1xf32> to vector<16x8xf32>
    %146 = arith.mulf %144, %145 : vector<16x8xf32>
    %147 = arith.addf %143, %146 : vector<16x8xf32>
    %c1_i32_87 = arith.constant 1 : i32
    %148 = tpu.dynamic_rotate %141 by %c1_i32_87 dim 0 : vector<16x8xf32>, i32 -> vector<16x8xf32>
    %149 = vector.broadcast %10 : vector<16x1xf32> to vector<16x8xf32>
    %150 = arith.mulf %148, %149 : vector<16x8xf32>
    %151 = arith.addf %147, %150 : vector<16x8xf32>
    %c4_88 = arith.constant 4 : index
    %c0_89 = arith.constant 0 : index
    %c0_90 = arith.constant 0 : index
    %152 = vector.load %arg2[%c4_88, %c0_89, %c0_90] : memref<16x16x8xf32, #tpu.memory_space<vmem>>, vector<1x16x8xf32>
    %153 = vector.shape_cast %152 : vector<1x16x8xf32> to vector<16x8xf32>
    %154 = vector.shape_cast %151 : vector<16x8xf32> to vector<1x16x8xf32>
    tpu.vector_store %arg2[%c4_88, %c0_89, %c0_90], %154 {strides = array<i32>} : memref<16x16x8xf32, #tpu.memory_space<vmem>>, vector<1x16x8xf32>,
    %c5_91 = arith.constant 5 : index
    %c0_92 = arith.constant 0 : index
    %c0_93 = arith.constant 0 : index
    %155 = vector.load %arg1[%c5_91, %c0_92, %c0_93] : memref<16x16x8xf32, #tpu.memory_space<vmem>>, vector<1x16x8xf32>
    %156 = vector.shape_cast %155 : vector<1x16x8xf32> to vector<16x8xf32>
    %cst_94 = arith.constant 0.522011459 : f32
    %157 = vector.broadcast %cst_94 : f32 to vector<16x8xf32>
    %158 = arith.mulf %157, %156 : vector<16x8xf32>
    %c4_95 = arith.constant 4 : index
    %c0_96 = arith.constant 0 : index
    %c0_97 = arith.constant 0 : index
    %159 = vector.load %arg1[%c4_95, %c0_96, %c0_97] : memref<16x16x8xf32, #tpu.memory_space<vmem>>, vector<1x16x8xf32>
    %160 = vector.shape_cast %159 : vector<1x16x8xf32> to vector<16x8xf32>
    %c6 = arith.constant 6 : index
    %c0_98 = arith.constant 0 : index
    %c0_99 = arith.constant 0 : index
    %161 = vector.load %arg1[%c6, %c0_98, %c0_99] : memref<16x16x8xf32, #tpu.memory_space<vmem>>, vector<1x16x8xf32>
    %162 = vector.shape_cast %161 : vector<1x16x8xf32> to vector<16x8xf32>
    %163 = arith.addf %160, %162 : vector<16x8xf32>
    %cst_100 = arith.constant 0.238994271 : f32
    %164 = vector.broadcast %cst_100 : f32 to vector<16x8xf32>
    %165 = arith.mulf %164, %163 : vector<16x8xf32>
    %166 = arith.addf %158, %165 : vector<16x8xf32>
    %cst_101 = arith.constant 0.522011459 : f32
    %167 = vector.broadcast %cst_101 : f32 to vector<16x8xf32>
    %168 = arith.mulf %167, %166 : vector<16x8xf32>
    %c15_i32_102 = arith.constant 15 : i32
    %169 = tpu.dynamic_rotate %166 by %c15_i32_102 dim 0 : vector<16x8xf32>, i32 -> vector<16x8xf32>
    %170 = vector.broadcast %5 : vector<16x1xf32> to vector<16x8xf32>
    %171 = arith.mulf %169, %170 : vector<16x8xf32>
    %172 = arith.addf %168, %171 : vector<16x8xf32>
    %c1_i32_103 = arith.constant 1 : i32
    %173 = tpu.dynamic_rotate %166 by %c1_i32_103 dim 0 : vector<16x8xf32>, i32 -> vector<16x8xf32>
    %174 = vector.broadcast %10 : vector<16x1xf32> to vector<16x8xf32>
    %175 = arith.mulf %173, %174 : vector<16x8xf32>
    %176 = arith.addf %172, %175 : vector<16x8xf32>
    %c5_104 = arith.constant 5 : index
    %c0_105 = arith.constant 0 : index
    %c0_106 = arith.constant 0 : index
    %177 = vector.load %arg2[%c5_104, %c0_105, %c0_106] : memref<16x16x8xf32, #tpu.memory_space<vmem>>, vector<1x16x8xf32>
    %178 = vector.shape_cast %177 : vector<1x16x8xf32> to vector<16x8xf32>
    %179 = vector.shape_cast %176 : vector<16x8xf32> to vector<1x16x8xf32>
    tpu.vector_store %arg2[%c5_104, %c0_105, %c0_106], %179 {strides = array<i32>} : memref<16x16x8xf32, #tpu.memory_space<vmem>>, vector<1x16x8xf32>,
    %c6_107 = arith.constant 6 : index
    %c0_108 = arith.constant 0 : index
    %c0_109 = arith.constant 0 : index
    %180 = vector.load %arg1[%c6_107, %c0_108, %c0_109] : memref<16x16x8xf32, #tpu.memory_space<vmem>>, vector<1x16x8xf32>
    %181 = vector.shape_cast %180 : vector<1x16x8xf32> to vector<16x8xf32>
    %cst_110 = arith.constant 0.522011459 : f32
    %182 = vector.broadcast %cst_110 : f32 to vector<16x8xf32>
    %183 = arith.mulf %182, %181 : vector<16x8xf32>
    %c5_111 = arith.constant 5 : index
    %c0_112 = arith.constant 0 : index
    %c0_113 = arith.constant 0 : index
    %184 = vector.load %arg1[%c5_111, %c0_112, %c0_113] : memref<16x16x8xf32, #tpu.memory_space<vmem>>, vector<1x16x8xf32>
    %185 = vector.shape_cast %184 : vector<1x16x8xf32> to vector<16x8xf32>
    %c7 = arith.constant 7 : index
    %c0_114 = arith.constant 0 : index
    %c0_115 = arith.constant 0 : index
    %186 = vector.load %arg1[%c7, %c0_114, %c0_115] : memref<16x16x8xf32, #tpu.memory_space<vmem>>, vector<1x16x8xf32>
    %187 = vector.shape_cast %186 : vector<1x16x8xf32> to vector<16x8xf32>
    %188 = arith.addf %185, %187 : vector<16x8xf32>
    %cst_116 = arith.constant 0.238994271 : f32
    %189 = vector.broadcast %cst_116 : f32 to vector<16x8xf32>
    %190 = arith.mulf %189, %188 : vector<16x8xf32>
    %191 = arith.addf %183, %190 : vector<16x8xf32>
    %cst_117 = arith.constant 0.522011459 : f32
    %192 = vector.broadcast %cst_117 : f32 to vector<16x8xf32>
    %193 = arith.mulf %192, %191 : vector<16x8xf32>
    %c15_i32_118 = arith.constant 15 : i32
    %194 = tpu.dynamic_rotate %191 by %c15_i32_118 dim 0 : vector<16x8xf32>, i32 -> vector<16x8xf32>
    %195 = vector.broadcast %5 : vector<16x1xf32> to vector<16x8xf32>
    %196 = arith.mulf %194, %195 : vector<16x8xf32>
    %197 = arith.addf %193, %196 : vector<16x8xf32>
    %c1_i32_119 = arith.constant 1 : i32
    %198 = tpu.dynamic_rotate %191 by %c1_i32_119 dim 0 : vector<16x8xf32>, i32 -> vector<16x8xf32>
    %199 = vector.broadcast %10 : vector<16x1xf32> to vector<16x8xf32>
    %200 = arith.mulf %198, %199 : vector<16x8xf32>
    %201 = arith.addf %197, %200 : vector<16x8xf32>
    %c6_120 = arith.constant 6 : index
    %c0_121 = arith.constant 0 : index
    %c0_122 = arith.constant 0 : index
    %202 = vector.load %arg2[%c6_120, %c0_121, %c0_122] : memref<16x16x8xf32, #tpu.memory_space<vmem>>, vector<1x16x8xf32>
    %203 = vector.shape_cast %202 : vector<1x16x8xf32> to vector<16x8xf32>
    %204 = vector.shape_cast %201 : vector<16x8xf32> to vector<1x16x8xf32>
    tpu.vector_store %arg2[%c6_120, %c0_121, %c0_122], %204 {strides = array<i32>} : memref<16x16x8xf32, #tpu.memory_space<vmem>>, vector<1x16x8xf32>,
    %c7_123 = arith.constant 7 : index
    %c0_124 = arith.constant 0 : index
    %c0_125 = arith.constant 0 : index
    %205 = vector.load %arg1[%c7_123, %c0_124, %c0_125] : memref<16x16x8xf32, #tpu.memory_space<vmem>>, vector<1x16x8xf32>
    %206 = vector.shape_cast %205 : vector<1x16x8xf32> to vector<16x8xf32>
    %cst_126 = arith.constant 0.522011459 : f32
    %207 = vector.broadcast %cst_126 : f32 to vector<16x8xf32>
    %208 = arith.mulf %207, %206 : vector<16x8xf32>
    %c6_127 = arith.constant 6 : index
    %c0_128 = arith.constant 0 : index
    %c0_129 = arith.constant 0 : index
    %209 = vector.load %arg1[%c6_127, %c0_128, %c0_129] : memref<16x16x8xf32, #tpu.memory_space<vmem>>, vector<1x16x8xf32>
    %210 = vector.shape_cast %209 : vector<1x16x8xf32> to vector<16x8xf32>
    %c8 = arith.constant 8 : index
    %c0_130 = arith.constant 0 : index
    %c0_131 = arith.constant 0 : index
    %211 = vector.load %arg1[%c8, %c0_130, %c0_131] : memref<16x16x8xf32, #tpu.memory_space<vmem>>, vector<1x16x8xf32>
    %212 = vector.shape_cast %211 : vector<1x16x8xf32> to vector<16x8xf32>
    %213 = arith.addf %210, %212 : vector<16x8xf32>
    %cst_132 = arith.constant 0.238994271 : f32
    %214 = vector.broadcast %cst_132 : f32 to vector<16x8xf32>
    %215 = arith.mulf %214, %213 : vector<16x8xf32>
    %216 = arith.addf %208, %215 : vector<16x8xf32>
    %cst_133 = arith.constant 0.522011459 : f32
    %217 = vector.broadcast %cst_133 : f32 to vector<16x8xf32>
    %218 = arith.mulf %217, %216 : vector<16x8xf32>
    %c15_i32_134 = arith.constant 15 : i32
    %219 = tpu.dynamic_rotate %216 by %c15_i32_134 dim 0 : vector<16x8xf32>, i32 -> vector<16x8xf32>
    %220 = vector.broadcast %5 : vector<16x1xf32> to vector<16x8xf32>
    %221 = arith.mulf %219, %220 : vector<16x8xf32>
    %222 = arith.addf %218, %221 : vector<16x8xf32>
    %c1_i32_135 = arith.constant 1 : i32
    %223 = tpu.dynamic_rotate %216 by %c1_i32_135 dim 0 : vector<16x8xf32>, i32 -> vector<16x8xf32>
    %224 = vector.broadcast %10 : vector<16x1xf32> to vector<16x8xf32>
    %225 = arith.mulf %223, %224 : vector<16x8xf32>
    %226 = arith.addf %222, %225 : vector<16x8xf32>
    %c7_136 = arith.constant 7 : index
    %c0_137 = arith.constant 0 : index
    %c0_138 = arith.constant 0 : index
    %227 = vector.load %arg2[%c7_136, %c0_137, %c0_138] : memref<16x16x8xf32, #tpu.memory_space<vmem>>, vector<1x16x8xf32>
    %228 = vector.shape_cast %227 : vector<1x16x8xf32> to vector<16x8xf32>
    %229 = vector.shape_cast %226 : vector<16x8xf32> to vector<1x16x8xf32>
    tpu.vector_store %arg2[%c7_136, %c0_137, %c0_138], %229 {strides = array<i32>} : memref<16x16x8xf32, #tpu.memory_space<vmem>>, vector<1x16x8xf32>,
    %c8_139 = arith.constant 8 : index
    %c0_140 = arith.constant 0 : index
    %c0_141 = arith.constant 0 : index
    %230 = vector.load %arg1[%c8_139, %c0_140, %c0_141] : memref<16x16x8xf32, #tpu.memory_space<vmem>>, vector<1x16x8xf32>
    %231 = vector.shape_cast %230 : vector<1x16x8xf32> to vector<16x8xf32>
    %cst_142 = arith.constant 0.522011459 : f32
    %232 = vector.broadcast %cst_142 : f32 to vector<16x8xf32>
    %233 = arith.mulf %232, %231 : vector<16x8xf32>
    %c7_143 = arith.constant 7 : index
    %c0_144 = arith.constant 0 : index
    %c0_145 = arith.constant 0 : index
    %234 = vector.load %arg1[%c7_143, %c0_144, %c0_145] : memref<16x16x8xf32, #tpu.memory_space<vmem>>, vector<1x16x8xf32>
    %235 = vector.shape_cast %234 : vector<1x16x8xf32> to vector<16x8xf32>
    %c9 = arith.constant 9 : index
    %c0_146 = arith.constant 0 : index
    %c0_147 = arith.constant 0 : index
    %236 = vector.load %arg1[%c9, %c0_146, %c0_147] : memref<16x16x8xf32, #tpu.memory_space<vmem>>, vector<1x16x8xf32>
    %237 = vector.shape_cast %236 : vector<1x16x8xf32> to vector<16x8xf32>
    %238 = arith.addf %235, %237 : vector<16x8xf32>
    %cst_148 = arith.constant 0.238994271 : f32
    %239 = vector.broadcast %cst_148 : f32 to vector<16x8xf32>
    %240 = arith.mulf %239, %238 : vector<16x8xf32>
    %241 = arith.addf %233, %240 : vector<16x8xf32>
    %cst_149 = arith.constant 0.522011459 : f32
    %242 = vector.broadcast %cst_149 : f32 to vector<16x8xf32>
    %243 = arith.mulf %242, %241 : vector<16x8xf32>
    %c15_i32_150 = arith.constant 15 : i32
    %244 = tpu.dynamic_rotate %241 by %c15_i32_150 dim 0 : vector<16x8xf32>, i32 -> vector<16x8xf32>
    %245 = vector.broadcast %5 : vector<16x1xf32> to vector<16x8xf32>
    %246 = arith.mulf %244, %245 : vector<16x8xf32>
    %247 = arith.addf %243, %246 : vector<16x8xf32>
    %c1_i32_151 = arith.constant 1 : i32
    %248 = tpu.dynamic_rotate %241 by %c1_i32_151 dim 0 : vector<16x8xf32>, i32 -> vector<16x8xf32>
    %249 = vector.broadcast %10 : vector<16x1xf32> to vector<16x8xf32>
    %250 = arith.mulf %248, %249 : vector<16x8xf32>
    %251 = arith.addf %247, %250 : vector<16x8xf32>
    %c8_152 = arith.constant 8 : index
    %c0_153 = arith.constant 0 : index
    %c0_154 = arith.constant 0 : index
    %252 = vector.load %arg2[%c8_152, %c0_153, %c0_154] : memref<16x16x8xf32, #tpu.memory_space<vmem>>, vector<1x16x8xf32>
    %253 = vector.shape_cast %252 : vector<1x16x8xf32> to vector<16x8xf32>
    %254 = vector.shape_cast %251 : vector<16x8xf32> to vector<1x16x8xf32>
    tpu.vector_store %arg2[%c8_152, %c0_153, %c0_154], %254 {strides = array<i32>} : memref<16x16x8xf32, #tpu.memory_space<vmem>>, vector<1x16x8xf32>,
    %c9_155 = arith.constant 9 : index
    %c0_156 = arith.constant 0 : index
    %c0_157 = arith.constant 0 : index
    %255 = vector.load %arg1[%c9_155, %c0_156, %c0_157] : memref<16x16x8xf32, #tpu.memory_space<vmem>>, vector<1x16x8xf32>
    %256 = vector.shape_cast %255 : vector<1x16x8xf32> to vector<16x8xf32>
    %cst_158 = arith.constant 0.522011459 : f32
    %257 = vector.broadcast %cst_158 : f32 to vector<16x8xf32>
    %258 = arith.mulf %257, %256 : vector<16x8xf32>
    %c8_159 = arith.constant 8 : index
    %c0_160 = arith.constant 0 : index
    %c0_161 = arith.constant 0 : index
    %259 = vector.load %arg1[%c8_159, %c0_160, %c0_161] : memref<16x16x8xf32, #tpu.memory_space<vmem>>, vector<1x16x8xf32>
    %260 = vector.shape_cast %259 : vector<1x16x8xf32> to vector<16x8xf32>
    %c10 = arith.constant 10 : index
    %c0_162 = arith.constant 0 : index
    %c0_163 = arith.constant 0 : index
    %261 = vector.load %arg1[%c10, %c0_162, %c0_163] : memref<16x16x8xf32, #tpu.memory_space<vmem>>, vector<1x16x8xf32>
    %262 = vector.shape_cast %261 : vector<1x16x8xf32> to vector<16x8xf32>
    %263 = arith.addf %260, %262 : vector<16x8xf32>
    %cst_164 = arith.constant 0.238994271 : f32
    %264 = vector.broadcast %cst_164 : f32 to vector<16x8xf32>
    %265 = arith.mulf %264, %263 : vector<16x8xf32>
    %266 = arith.addf %258, %265 : vector<16x8xf32>
    %cst_165 = arith.constant 0.522011459 : f32
    %267 = vector.broadcast %cst_165 : f32 to vector<16x8xf32>
    %268 = arith.mulf %267, %266 : vector<16x8xf32>
    %c15_i32_166 = arith.constant 15 : i32
    %269 = tpu.dynamic_rotate %266 by %c15_i32_166 dim 0 : vector<16x8xf32>, i32 -> vector<16x8xf32>
    %270 = vector.broadcast %5 : vector<16x1xf32> to vector<16x8xf32>
    %271 = arith.mulf %269, %270 : vector<16x8xf32>
    %272 = arith.addf %268, %271 : vector<16x8xf32>
    %c1_i32_167 = arith.constant 1 : i32
    %273 = tpu.dynamic_rotate %266 by %c1_i32_167 dim 0 : vector<16x8xf32>, i32 -> vector<16x8xf32>
    %274 = vector.broadcast %10 : vector<16x1xf32> to vector<16x8xf32>
    %275 = arith.mulf %273, %274 : vector<16x8xf32>
    %276 = arith.addf %272, %275 : vector<16x8xf32>
    %c9_168 = arith.constant 9 : index
    %c0_169 = arith.constant 0 : index
    %c0_170 = arith.constant 0 : index
    %277 = vector.load %arg2[%c9_168, %c0_169, %c0_170] : memref<16x16x8xf32, #tpu.memory_space<vmem>>, vector<1x16x8xf32>
    %278 = vector.shape_cast %277 : vector<1x16x8xf32> to vector<16x8xf32>
    %279 = vector.shape_cast %276 : vector<16x8xf32> to vector<1x16x8xf32>
    tpu.vector_store %arg2[%c9_168, %c0_169, %c0_170], %279 {strides = array<i32>} : memref<16x16x8xf32, #tpu.memory_space<vmem>>, vector<1x16x8xf32>,
    %c10_171 = arith.constant 10 : index
    %c0_172 = arith.constant 0 : index
    %c0_173 = arith.constant 0 : index
    %280 = vector.load %arg1[%c10_171, %c0_172, %c0_173] : memref<16x16x8xf32, #tpu.memory_space<vmem>>, vector<1x16x8xf32>
    %281 = vector.shape_cast %280 : vector<1x16x8xf32> to vector<16x8xf32>
    %cst_174 = arith.constant 0.522011459 : f32
    %282 = vector.broadcast %cst_174 : f32 to vector<16x8xf32>
    %283 = arith.mulf %282, %281 : vector<16x8xf32>
    %c9_175 = arith.constant 9 : index
    %c0_176 = arith.constant 0 : index
    %c0_177 = arith.constant 0 : index
    %284 = vector.load %arg1[%c9_175, %c0_176, %c0_177] : memref<16x16x8xf32, #tpu.memory_space<vmem>>, vector<1x16x8xf32>
    %285 = vector.shape_cast %284 : vector<1x16x8xf32> to vector<16x8xf32>
    %c11 = arith.constant 11 : index
    %c0_178 = arith.constant 0 : index
    %c0_179 = arith.constant 0 : index
    %286 = vector.load %arg1[%c11, %c0_178, %c0_179] : memref<16x16x8xf32, #tpu.memory_space<vmem>>, vector<1x16x8xf32>
    %287 = vector.shape_cast %286 : vector<1x16x8xf32> to vector<16x8xf32>
    %288 = arith.addf %285, %287 : vector<16x8xf32>
    %cst_180 = arith.constant 0.238994271 : f32
    %289 = vector.broadcast %cst_180 : f32 to vector<16x8xf32>
    %290 = arith.mulf %289, %288 : vector<16x8xf32>
    %291 = arith.addf %283, %290 : vector<16x8xf32>
    %cst_181 = arith.constant 0.522011459 : f32
    %292 = vector.broadcast %cst_181 : f32 to vector<16x8xf32>
    %293 = arith.mulf %292, %291 : vector<16x8xf32>
    %c15_i32_182 = arith.constant 15 : i32
    %294 = tpu.dynamic_rotate %291 by %c15_i32_182 dim 0 : vector<16x8xf32>, i32 -> vector<16x8xf32>
    %295 = vector.broadcast %5 : vector<16x1xf32> to vector<16x8xf32>
    %296 = arith.mulf %294, %295 : vector<16x8xf32>
    %297 = arith.addf %293, %296 : vector<16x8xf32>
    %c1_i32_183 = arith.constant 1 : i32
    %298 = tpu.dynamic_rotate %291 by %c1_i32_183 dim 0 : vector<16x8xf32>, i32 -> vector<16x8xf32>
    %299 = vector.broadcast %10 : vector<16x1xf32> to vector<16x8xf32>
    %300 = arith.mulf %298, %299 : vector<16x8xf32>
    %301 = arith.addf %297, %300 : vector<16x8xf32>
    %c10_184 = arith.constant 10 : index
    %c0_185 = arith.constant 0 : index
    %c0_186 = arith.constant 0 : index
    %302 = vector.load %arg2[%c10_184, %c0_185, %c0_186] : memref<16x16x8xf32, #tpu.memory_space<vmem>>, vector<1x16x8xf32>
    %303 = vector.shape_cast %302 : vector<1x16x8xf32> to vector<16x8xf32>
    %304 = vector.shape_cast %301 : vector<16x8xf32> to vector<1x16x8xf32>
    tpu.vector_store %arg2[%c10_184, %c0_185, %c0_186], %304 {strides = array<i32>} : memref<16x16x8xf32, #tpu.memory_space<vmem>>, vector<1x16x8xf32>,
    %c11_187 = arith.constant 11 : index
    %c0_188 = arith.constant 0 : index
    %c0_189 = arith.constant 0 : index
    %305 = vector.load %arg1[%c11_187, %c0_188, %c0_189] : memref<16x16x8xf32, #tpu.memory_space<vmem>>, vector<1x16x8xf32>
    %306 = vector.shape_cast %305 : vector<1x16x8xf32> to vector<16x8xf32>
    %cst_190 = arith.constant 0.522011459 : f32
    %307 = vector.broadcast %cst_190 : f32 to vector<16x8xf32>
    %308 = arith.mulf %307, %306 : vector<16x8xf32>
    %c10_191 = arith.constant 10 : index
    %c0_192 = arith.constant 0 : index
    %c0_193 = arith.constant 0 : index
    %309 = vector.load %arg1[%c10_191, %c0_192, %c0_193] : memref<16x16x8xf32, #tpu.memory_space<vmem>>, vector<1x16x8xf32>
    %310 = vector.shape_cast %309 : vector<1x16x8xf32> to vector<16x8xf32>
    %c12 = arith.constant 12 : index
    %c0_194 = arith.constant 0 : index
    %c0_195 = arith.constant 0 : index
    %311 = vector.load %arg1[%c12, %c0_194, %c0_195] : memref<16x16x8xf32, #tpu.memory_space<vmem>>, vector<1x16x8xf32>
    %312 = vector.shape_cast %311 : vector<1x16x8xf32> to vector<16x8xf32>
    %313 = arith.addf %310, %312 : vector<16x8xf32>
    %cst_196 = arith.constant 0.238994271 : f32
    %314 = vector.broadcast %cst_196 : f32 to vector<16x8xf32>
    %315 = arith.mulf %314, %313 : vector<16x8xf32>
    %316 = arith.addf %308, %315 : vector<16x8xf32>
    %cst_197 = arith.constant 0.522011459 : f32
    %317 = vector.broadcast %cst_197 : f32 to vector<16x8xf32>
    %318 = arith.mulf %317, %316 : vector<16x8xf32>
    %c15_i32_198 = arith.constant 15 : i32
    %319 = tpu.dynamic_rotate %316 by %c15_i32_198 dim 0 : vector<16x8xf32>, i32 -> vector<16x8xf32>
    %320 = vector.broadcast %5 : vector<16x1xf32> to vector<16x8xf32>
    %321 = arith.mulf %319, %320 : vector<16x8xf32>
    %322 = arith.addf %318, %321 : vector<16x8xf32>
    %c1_i32_199 = arith.constant 1 : i32
    %323 = tpu.dynamic_rotate %316 by %c1_i32_199 dim 0 : vector<16x8xf32>, i32 -> vector<16x8xf32>
    %324 = vector.broadcast %10 : vector<16x1xf32> to vector<16x8xf32>
    %325 = arith.mulf %323, %324 : vector<16x8xf32>
    %326 = arith.addf %322, %325 : vector<16x8xf32>
    %c11_200 = arith.constant 11 : index
    %c0_201 = arith.constant 0 : index
    %c0_202 = arith.constant 0 : index
    %327 = vector.load %arg2[%c11_200, %c0_201, %c0_202] : memref<16x16x8xf32, #tpu.memory_space<vmem>>, vector<1x16x8xf32>
    %328 = vector.shape_cast %327 : vector<1x16x8xf32> to vector<16x8xf32>
    %329 = vector.shape_cast %326 : vector<16x8xf32> to vector<1x16x8xf32>
    tpu.vector_store %arg2[%c11_200, %c0_201, %c0_202], %329 {strides = array<i32>} : memref<16x16x8xf32, #tpu.memory_space<vmem>>, vector<1x16x8xf32>,
    %c12_203 = arith.constant 12 : index
    %c0_204 = arith.constant 0 : index
    %c0_205 = arith.constant 0 : index
    %330 = vector.load %arg1[%c12_203, %c0_204, %c0_205] : memref<16x16x8xf32, #tpu.memory_space<vmem>>, vector<1x16x8xf32>
    %331 = vector.shape_cast %330 : vector<1x16x8xf32> to vector<16x8xf32>
    %cst_206 = arith.constant 0.522011459 : f32
    %332 = vector.broadcast %cst_206 : f32 to vector<16x8xf32>
    %333 = arith.mulf %332, %331 : vector<16x8xf32>
    %c11_207 = arith.constant 11 : index
    %c0_208 = arith.constant 0 : index
    %c0_209 = arith.constant 0 : index
    %334 = vector.load %arg1[%c11_207, %c0_208, %c0_209] : memref<16x16x8xf32, #tpu.memory_space<vmem>>, vector<1x16x8xf32>
    %335 = vector.shape_cast %334 : vector<1x16x8xf32> to vector<16x8xf32>
    %c13 = arith.constant 13 : index
    %c0_210 = arith.constant 0 : index
    %c0_211 = arith.constant 0 : index
    %336 = vector.load %arg1[%c13, %c0_210, %c0_211] : memref<16x16x8xf32, #tpu.memory_space<vmem>>, vector<1x16x8xf32>
    %337 = vector.shape_cast %336 : vector<1x16x8xf32> to vector<16x8xf32>
    %338 = arith.addf %335, %337 : vector<16x8xf32>
    %cst_212 = arith.constant 0.238994271 : f32
    %339 = vector.broadcast %cst_212 : f32 to vector<16x8xf32>
    %340 = arith.mulf %339, %338 : vector<16x8xf32>
    %341 = arith.addf %333, %340 : vector<16x8xf32>
    %cst_213 = arith.constant 0.522011459 : f32
    %342 = vector.broadcast %cst_213 : f32 to vector<16x8xf32>
    %343 = arith.mulf %342, %341 : vector<16x8xf32>
    %c15_i32_214 = arith.constant 15 : i32
    %344 = tpu.dynamic_rotate %341 by %c15_i32_214 dim 0 : vector<16x8xf32>, i32 -> vector<16x8xf32>
    %345 = vector.broadcast %5 : vector<16x1xf32> to vector<16x8xf32>
    %346 = arith.mulf %344, %345 : vector<16x8xf32>
    %347 = arith.addf %343, %346 : vector<16x8xf32>
    %c1_i32_215 = arith.constant 1 : i32
    %348 = tpu.dynamic_rotate %341 by %c1_i32_215 dim 0 : vector<16x8xf32>, i32 -> vector<16x8xf32>
    %349 = vector.broadcast %10 : vector<16x1xf32> to vector<16x8xf32>
    %350 = arith.mulf %348, %349 : vector<16x8xf32>
    %351 = arith.addf %347, %350 : vector<16x8xf32>
    %c12_216 = arith.constant 12 : index
    %c0_217 = arith.constant 0 : index
    %c0_218 = arith.constant 0 : index
    %352 = vector.load %arg2[%c12_216, %c0_217, %c0_218] : memref<16x16x8xf32, #tpu.memory_space<vmem>>, vector<1x16x8xf32>
    %353 = vector.shape_cast %352 : vector<1x16x8xf32> to vector<16x8xf32>
    %354 = vector.shape_cast %351 : vector<16x8xf32> to vector<1x16x8xf32>
    tpu.vector_store %arg2[%c12_216, %c0_217, %c0_218], %354 {strides = array<i32>} : memref<16x16x8xf32, #tpu.memory_space<vmem>>, vector<1x16x8xf32>,
    %c13_219 = arith.constant 13 : index
    %c0_220 = arith.constant 0 : index
    %c0_221 = arith.constant 0 : index
    %355 = vector.load %arg1[%c13_219, %c0_220, %c0_221] : memref<16x16x8xf32, #tpu.memory_space<vmem>>, vector<1x16x8xf32>
    %356 = vector.shape_cast %355 : vector<1x16x8xf32> to vector<16x8xf32>
    %cst_222 = arith.constant 0.522011459 : f32
    %357 = vector.broadcast %cst_222 : f32 to vector<16x8xf32>
    %358 = arith.mulf %357, %356 : vector<16x8xf32>
    %c12_223 = arith.constant 12 : index
    %c0_224 = arith.constant 0 : index
    %c0_225 = arith.constant 0 : index
    %359 = vector.load %arg1[%c12_223, %c0_224, %c0_225] : memref<16x16x8xf32, #tpu.memory_space<vmem>>, vector<1x16x8xf32>
    %360 = vector.shape_cast %359 : vector<1x16x8xf32> to vector<16x8xf32>
    %c14_226 = arith.constant 14 : index
    %c0_227 = arith.constant 0 : index
    %c0_228 = arith.constant 0 : index
    %361 = vector.load %arg1[%c14_226, %c0_227, %c0_228] : memref<16x16x8xf32, #tpu.memory_space<vmem>>, vector<1x16x8xf32>
    %362 = vector.shape_cast %361 : vector<1x16x8xf32> to vector<16x8xf32>
    %363 = arith.addf %360, %362 : vector<16x8xf32>
    %cst_229 = arith.constant 0.238994271 : f32
    %364 = vector.broadcast %cst_229 : f32 to vector<16x8xf32>
    %365 = arith.mulf %364, %363 : vector<16x8xf32>
    %366 = arith.addf %358, %365 : vector<16x8xf32>
    %cst_230 = arith.constant 0.522011459 : f32
    %367 = vector.broadcast %cst_230 : f32 to vector<16x8xf32>
    %368 = arith.mulf %367, %366 : vector<16x8xf32>
    %c15_i32_231 = arith.constant 15 : i32
    %369 = tpu.dynamic_rotate %366 by %c15_i32_231 dim 0 : vector<16x8xf32>, i32 -> vector<16x8xf32>
    %370 = vector.broadcast %5 : vector<16x1xf32> to vector<16x8xf32>
    %371 = arith.mulf %369, %370 : vector<16x8xf32>
    %372 = arith.addf %368, %371 : vector<16x8xf32>
    %c1_i32_232 = arith.constant 1 : i32
    %373 = tpu.dynamic_rotate %366 by %c1_i32_232 dim 0 : vector<16x8xf32>, i32 -> vector<16x8xf32>
    %374 = vector.broadcast %10 : vector<16x1xf32> to vector<16x8xf32>
    %375 = arith.mulf %373, %374 : vector<16x8xf32>
    %376 = arith.addf %372, %375 : vector<16x8xf32>
    %c13_233 = arith.constant 13 : index
    %c0_234 = arith.constant 0 : index
    %c0_235 = arith.constant 0 : index
    %377 = vector.load %arg2[%c13_233, %c0_234, %c0_235] : memref<16x16x8xf32, #tpu.memory_space<vmem>>, vector<1x16x8xf32>
    %378 = vector.shape_cast %377 : vector<1x16x8xf32> to vector<16x8xf32>
    %379 = vector.shape_cast %376 : vector<16x8xf32> to vector<1x16x8xf32>
    tpu.vector_store %arg2[%c13_233, %c0_234, %c0_235], %379 {strides = array<i32>} : memref<16x16x8xf32, #tpu.memory_space<vmem>>, vector<1x16x8xf32>,
    %c14_236 = arith.constant 14 : index
    %c0_237 = arith.constant 0 : index
    %c0_238 = arith.constant 0 : index
    %380 = vector.load %arg1[%c14_236, %c0_237, %c0_238] : memref<16x16x8xf32, #tpu.memory_space<vmem>>, vector<1x16x8xf32>
    %381 = vector.shape_cast %380 : vector<1x16x8xf32> to vector<16x8xf32>
    %cst_239 = arith.constant 0.522011459 : f32
    %382 = vector.broadcast %cst_239 : f32 to vector<16x8xf32>
    %383 = arith.mulf %382, %381 : vector<16x8xf32>
    %c13_240 = arith.constant 13 : index
    %c0_241 = arith.constant 0 : index
    %c0_242 = arith.constant 0 : index
    %384 = vector.load %arg1[%c13_240, %c0_241, %c0_242] : memref<16x16x8xf32, #tpu.memory_space<vmem>>, vector<1x16x8xf32>
    %385 = vector.shape_cast %384 : vector<1x16x8xf32> to vector<16x8xf32>
    %c15_243 = arith.constant 15 : index
    %c0_244 = arith.constant 0 : index
    %c0_245 = arith.constant 0 : index
    %386 = vector.load %arg1[%c15_243, %c0_244, %c0_245] : memref<16x16x8xf32, #tpu.memory_space<vmem>>, vector<1x16x8xf32>
    %387 = vector.shape_cast %386 : vector<1x16x8xf32> to vector<16x8xf32>
    %388 = arith.addf %385, %387 : vector<16x8xf32>
    %cst_246 = arith.constant 0.238994271 : f32
    %389 = vector.broadcast %cst_246 : f32 to vector<16x8xf32>
    %390 = arith.mulf %389, %388 : vector<16x8xf32>
    %391 = arith.addf %383, %390 : vector<16x8xf32>
    %cst_247 = arith.constant 0.522011459 : f32
    %392 = vector.broadcast %cst_247 : f32 to vector<16x8xf32>
    %393 = arith.mulf %392, %391 : vector<16x8xf32>
    %c15_i32_248 = arith.constant 15 : i32
    %394 = tpu.dynamic_rotate %391 by %c15_i32_248 dim 0 : vector<16x8xf32>, i32 -> vector<16x8xf32>
    %395 = vector.broadcast %5 : vector<16x1xf32> to vector<16x8xf32>
    %396 = arith.mulf %394, %395 : vector<16x8xf32>
    %397 = arith.addf %393, %396 : vector<16x8xf32>
    %c1_i32_249 = arith.constant 1 : i32
    %398 = tpu.dynamic_rotate %391 by %c1_i32_249 dim 0 : vector<16x8xf32>, i32 -> vector<16x8xf32>
    %399 = vector.broadcast %10 : vector<16x1xf32> to vector<16x8xf32>
    %400 = arith.mulf %398, %399 : vector<16x8xf32>
    %401 = arith.addf %397, %400 : vector<16x8xf32>
    %c14_250 = arith.constant 14 : index
    %c0_251 = arith.constant 0 : index
    %c0_252 = arith.constant 0 : index
    %402 = vector.load %arg2[%c14_250, %c0_251, %c0_252] : memref<16x16x8xf32, #tpu.memory_space<vmem>>, vector<1x16x8xf32>
    %403 = vector.shape_cast %402 : vector<1x16x8xf32> to vector<16x8xf32>
    %404 = vector.shape_cast %401 : vector<16x8xf32> to vector<1x16x8xf32>
    tpu.vector_store %arg2[%c14_250, %c0_251, %c0_252], %404 {strides = array<i32>} : memref<16x16x8xf32, #tpu.memory_space<vmem>>, vector<1x16x8xf32>,
    return
  }
  func.func @transform_0(%arg0: i32) -> (i32, i32, i32) {
    %c0_i32 = arith.constant 0 : i32
    %c0_i32_0 = arith.constant 0 : i32
    %c0_i32_1 = arith.constant 0 : i32
    return %c0_i32, %c0_i32_0, %arg0 : i32, i32, i32
  }
  func.func @transform_1(%arg0: i32) -> (i32, i32, i32) {
    %c0_i32 = arith.constant 0 : i32
    %c0_i32_0 = arith.constant 0 : i32
    %c0_i32_1 = arith.constant 0 : i32
    return %c0_i32, %c0_i32_0, %arg0 : i32, i32, i32
  }
}

</mosaic_0001>

<llo_original>
// kernel: tpu_custom_call.1
$region0: #{tpu_custom_call.1}
  #allocation0 [shape = 'u32[]', space=smem, size = 0x4, offset = 0x4, fixed_abs, tag = 'smem constant byte address 0x4 - core index']
  #allocation1 [shape = 'u32[144,128]{1,0:T(1,128)}', space=vmem, size = 0x12000, scoped, tag = 'internal scratch']
  %s0 = inlined_call_operand.vmem [shape: f32[16,16,8], index: 0, kind: input, shape index: {}]
  %s1 = inlined_call_operand.vmem [shape: f32[16,16,8], index: 1, kind: output, shape index: {}]
  %s2 = sld [smem:[#allocation0]]
  $region14: #{tpu_custom_call.1} parent=0
    _
  %s4 = ssub.s32 1, %s2
  %s5 = scalar_select 0, %s4, %s2
  // Predicated region
  $region2: #{tpu_custom_call.1} parent=0 // pred_check
    _
  $region3: #{tpu_custom_call.1} parent=0 // pred_check_branch
    %7 = sbr.rel (0) target = $region5
  $region4: #{tpu_custom_call.1} parent=0 // pred_region
    _
  $region5: #{tpu_custom_call.1} parent=0 // pred_fallthru
    _
  %v8 = vlaneseq
  %v9 = vshrl.u32 %v8, 7
  %v10 = vadd.s32 %v9, 8
  %vm11 = vcmp.lt.s32.totalorder %v9, 15
  %vm12 = vcmp.lt.s32.totalorder %v10, 15
  %v13 = vsel %vm11, 0.23899427, 0.0
  %v14 = vsel %vm12, 0.23899427, 0.0
  %vm15 = vcmp.ge.s32.totalorder %v9, 1
  %vm16 = vcmp.ge.s32.totalorder %v10, 1
  %v17 = vsel %vm15, 0.23899427, 0.0
  %v18 = vsel %vm16, 0.23899427, 0.0
  %v19 = vld [vmem:[%s0] sm:$0xff]
  %v20 = vld [vmem:[%s0 + $0x8] sm:$0xff]
  %v21 = vmul.f32 %v19, 0.52201146
  %v22 = vmul.f32 %v20, 0.52201146
  %s23 = scalar_lea.vmem %s0, 16
  %v24 = vld [vmem:[%s23] sm:$0xff]
  %v25 = vld [vmem:[%s23 + $0x8] sm:$0xff]
  %v26 = vmul.f32 %v24, 0.23899427
  %v27 = vmul.f32 %v25, 0.23899427
  %v28 = vadd.f32 %v21, %v26
  %v29 = vadd.f32 %v22, %v27
  %v30 = vmul.f32 %v28, 0.52201146
  %v31 = vmul.f32 %v29, 0.52201146
  %v32 = vrot.slane %v28, 1
  %v33 = vrot.slane %v29, 1
  %vm34 = vcmp.lt.s32.totalorder %v9, 7
  %v35 = vsel %vm34, %v32, %v33
  %v36 = vsel %vm34, %v33, %v32
  %v37 = vmul.f32 %v35, %v13
  %v38 = vmul.f32 %v36, %v14
  %v39 = vadd.f32 %v30, %v37
  %v40 = vadd.f32 %v31, %v38
  %v41 = vrot.slane %v28, 7
  %v42 = vrot.slane %v29, 7
  %vm43 = vcmp.lt.s32.totalorder %v9, 1
  %v44 = vsel %vm43, %v41, %v42
  %v45 = vsel %vm43, %v42, %v41
  %v46 = vmul.f32 %v45, %v17
  %v47 = vmul.f32 %v44, %v18
  %v48 = vadd.f32 %v39, %v46
  %v49 = vadd.f32 %v40, %v47
  %vm50 = vcmask 64512
  %51 = vst.msk [vmem:[%s1] sm:$0xff] %vm50, %v48
  %52 = vst.msk [vmem:[%s1 + $0x8] sm:$0xff] %vm50, %v49
  %s53 = scalar_lea.vmem %s0, 224
  %v54 = vld [vmem:[%s53] sm:$0xff]
  %v55 = vld [vmem:[%s53 + $0x8] sm:$0xff]
  %v56 = vmul.f32 %v54, 0.23899427
  %v57 = vmul.f32 %v55, 0.23899427
  %s58 = scalar_lea.vmem %s0, 240
  %v59 = vld [vmem:[%s58] sm:$0xff]
  %v60 = vld [vmem:[%s58 + $0x8] sm:$0xff]
  %v61 = vmul.f32 %v59, 0.52201146
  %v62 = vmul.f32 %v60, 0.52201146
  %v63 = vadd.f32 %v56, %v61
  %v64 = vadd.f32 %v57, %v62
  %v65 = vmul.f32 %v63, 0.52201146
  %v66 = vmul.f32 %v64, 0.52201146
  %v67 = vrot.slane %v63, 1
  %v68 = vrot.slane %v64, 1
  %v69 = vsel %vm34, %v67, %v68
  %v70 = vsel %vm34, %v68, %v67
  %v71 = vmul.f32 %v69, %v13
  %v72 = vmul.f32 %v70, %v14
  %v73 = vadd.f32 %v65, %v71
  %v74 = vadd.f32 %v66, %v72
  %v75 = vrot.slane %v63, 7
  %v76 = vrot.slane %v64, 7
  %v77 = vsel %vm43, %v75, %v76
  %v78 = vsel %vm43, %v76, %v75
  %v79 = vmul.f32 %v78, %v17
  %v80 = vmul.f32 %v77, %v18
  %v81 = vadd.f32 %v73, %v79
  %v82 = vadd.f32 %v74, %v80
  %s83 = scalar_lea.vmem %s1, 240
  %84 = vst.msk [vmem:[%s83] sm:$0xff] %vm50, %v81
  %85 = vst.msk [vmem:[%s83 + $0x8] sm:$0xff] %vm50, %v82
  %v86 = vld [vmem:[%s23] sm:$0xff]
  %v87 = vld [vmem:[%s23 + $0x8] sm:$0xff]
  %v88 = vmul.f32 %v86, 0.52201146
  %v89 = vmul.f32 %v87, 0.52201146
  %v90 = vld [vmem:[%s0] sm:$0xff]
  %v91 = vld [vmem:[%s0 + $0x8] sm:$0xff]
  %s92 = scalar_lea.vmem %s0, 32
  %v93 = vld [vmem:[%s92] sm:$0xff]
  %v94 = vld [vmem:[%s92 + $0x8] sm:$0xff]
  %v95 = vadd.f32 %v90, %v93
  %v96 = vadd.f32 %v91, %v94
  %v97 = vmul.f32 %v95, 0.23899427
  %v98 = vmul.f32 %v96, 0.23899427
  %v99 = vadd.f32 %v88, %v97
  %v100 = vadd.f32 %v89, %v98
  %v101 = vmul.f32 %v99, 0.52201146
  %v102 = vmul.f32 %v100, 0.52201146
  %v103 = vrot.slane %v99, 1
  %v104 = vrot.slane %v100, 1
  %v105 = vsel %vm34, %v103, %v104
  %v106 = vsel %vm34, %v104, %v103
  %v107 = vmul.f32 %v105, %v13
  %v108 = vmul.f32 %v106, %v14
  %v109 = vadd.f32 %v101, %v107
  %v110 = vadd.f32 %v102, %v108
  %v111 = vrot.slane %v99, 7
  %v112 = vrot.slane %v100, 7
  %v113 = vsel %vm43, %v111, %v112
  %v114 = vsel %vm43, %v112, %v111
  %v115 = vmul.f32 %v114, %v17
  %v116 = vmul.f32 %v113, %v18
  %v117 = vadd.f32 %v109, %v115
  %v118 = vadd.f32 %v110, %v116
  %s119 = scalar_lea.vmem %s1, 16
  %120 = vst.msk [vmem:[%s119] sm:$0xff] %vm50, %v117
  %121 = vst.msk [vmem:[%s119 + $0x8] sm:$0xff] %vm50, %v118
  %v122 = vld [vmem:[%s92] sm:$0xff]
  %v123 = vld [vmem:[%s92 + $0x8] sm:$0xff]
  %v124 = vmul.f32 %v122, 0.52201146
  %v125 = vmul.f32 %v123, 0.52201146
  %v126 = vld [vmem:[%s23] sm:$0xff]
  %v127 = vld [vmem:[%s23 + $0x8] sm:$0xff]
  %s128 = scalar_lea.vmem %s0, 48
  %v129 = vld [vmem:[%s128] sm:$0xff]
  %v130 = vld [vmem:[%s128 + $0x8] sm:$0xff]
  %v131 = vadd.f32 %v126, %v129
  %v132 = vadd.f32 %v127, %v130
  %v133 = vmul.f32 %v131, 0.23899427
  %v134 = vmul.f32 %v132, 0.23899427
  %v135 = vadd.f32 %v124, %v133
  %v136 = vadd.f32 %v125, %v134
  %v137 = vmul.f32 %v135, 0.52201146
  %v138 = vmul.f32 %v136, 0.52201146
  %v139 = vrot.slane %v135, 1
  %v140 = vrot.slane %v136, 1
  %v141 = vsel %vm34, %v139, %v140
  %v142 = vsel %vm34, %v140, %v139
  %v143 = vmul.f32 %v141, %v13
  %v144 = vmul.f32 %v142, %v14
  %v145 = vadd.f32 %v137, %v143
  %v146 = vadd.f32 %v138, %v144
  %v147 = vrot.slane %v135, 7
  %v148 = vrot.slane %v136, 7
  %v149 = vsel %vm43, %v147, %v148
  %v150 = vsel %vm43, %v148, %v147
  %v151 = vmul.f32 %v150, %v17
  %v152 = vmul.f32 %v149, %v18
  %v153 = vadd.f32 %v145, %v151
  %v154 = vadd.f32 %v146, %v152
  %s155 = scalar_lea.vmem %s1, 32
  %156 = vst.msk [vmem:[%s155] sm:$0xff] %vm50, %v153
  %157 = vst.msk [vmem:[%s155 + $0x8] sm:$0xff] %vm50, %v154
  %v158 = vld [vmem:[%s128] sm:$0xff]
  %v159 = vld [vmem:[%s128 + $0x8] sm:$0xff]
  %v160 = vmul.f32 %v158, 0.52201146
  %v161 = vmul.f32 %v159, 0.52201146
  %v162 = vld [vmem:[%s92] sm:$0xff]
  %v163 = vld [vmem:[%s92 + $0x8] sm:$0xff]
  %s164 = scalar_lea.vmem %s0, 64
  %v165 = vld [vmem:[%s164] sm:$0xff]
  %v166 = vld [vmem:[%s164 + $0x8] sm:$0xff]
  %v167 = vadd.f32 %v162, %v165
  %v168 = vadd.f32 %v163, %v166
  %v169 = vmul.f32 %v167, 0.23899427
  %v170 = vmul.f32 %v168, 0.23899427
  %v171 = vadd.f32 %v160, %v169
  %v172 = vadd.f32 %v161, %v170
  %v173 = vmul.f32 %v171, 0.52201146
  %v174 = vmul.f32 %v172, 0.52201146
  %v175 = vrot.slane %v171, 1
  %v176 = vrot.slane %v172, 1
  %v177 = vsel %vm34, %v175, %v176
  %v178 = vsel %vm34, %v176, %v175
  %v179 = vmul.f32 %v177, %v13
  %v180 = vmul.f32 %v178, %v14
  %v181 = vadd.f32 %v173, %v179
  %v182 = vadd.f32 %v174, %v180
  %v183 = vrot.slane %v171, 7
  %v184 = vrot.slane %v172, 7
  %v185 = vsel %vm43, %v183, %v184
  %v186 = vsel %vm43, %v184, %v183
  %v187 = vmul.f32 %v186, %v17
  %v188 = vmul.f32 %v185, %v18
  %v189 = vadd.f32 %v181, %v187
  %v190 = vadd.f32 %v182, %v188
  %s191 = scalar_lea.vmem %s1, 48
  %192 = vst.msk [vmem:[%s191] sm:$0xff] %vm50, %v189
  %193 = vst.msk [vmem:[%s191 + $0x8] sm:$0xff] %vm50, %v190
  %v194 = vld [vmem:[%s164] sm:$0xff]
  %v195 = vld [vmem:[%s164 + $0x8] sm:$0xff]
  %v196 = vmul.f32 %v194, 0.52201146
  %v197 = vmul.f32 %v195, 0.52201146
  %v198 = vld [vmem:[%s128] sm:$0xff]
  %v199 = vld [vmem:[%s128 + $0x8] sm:$0xff]
  %s200 = scalar_lea.vmem %s0, 80
  %v201 = vld [vmem:[%s200] sm:$0xff]
  %v202 = vld [vmem:[%s200 + $0x8] sm:$0xff]
  %v203 = vadd.f32 %v198, %v201
  %v204 = vadd.f32 %v199, %v202
  %v205 = vmul.f32 %v203, 0.23899427
  %v206 = vmul.f32 %v204, 0.23899427
  %v207 = vadd.f32 %v196, %v205
  %v208 = vadd.f32 %v197, %v206
  %v209 = vmul.f32 %v207, 0.52201146
  %v210 = vmul.f32 %v208, 0.52201146
  %v211 = vrot.slane %v207, 1
  %v212 = vrot.slane %v208, 1
  %v213 = vsel %vm34, %v211, %v212
  %v214 = vsel %vm34, %v212, %v211
  %v215 = vmul.f32 %v213, %v13
  %v216 = vmul.f32 %v214, %v14
  %v217 = vadd.f32 %v209, %v215
  %v218 = vadd.f32 %v210, %v216
  %v219 = vrot.slane %v207, 7
  %v220 = vrot.slane %v208, 7
  %v221 = vsel %vm43, %v219, %v220
  %v222 = vsel %vm43, %v220, %v219
  %v223 = vmul.f32 %v222, %v17
  %v224 = vmul.f32 %v221, %v18
  %v225 = vadd.f32 %v217, %v223
  %v226 = vadd.f32 %v218, %v224
  %s227 = scalar_lea.vmem %s1, 64
  %228 = vst.msk [vmem:[%s227] sm:$0xff] %vm50, %v225
  %229 = vst.msk [vmem:[%s227 + $0x8] sm:$0xff] %vm50, %v226
  %v230 = vld [vmem:[%s200] sm:$0xff]
  %v231 = vld [vmem:[%s200 + $0x8] sm:$0xff]
  %v232 = vmul.f32 %v230, 0.52201146
  %v233 = vmul.f32 %v231, 0.52201146
  %v234 = vld [vmem:[%s164] sm:$0xff]
  %v235 = vld [vmem:[%s164 + $0x8] sm:$0xff]
  %s236 = scalar_lea.vmem %s0, 96
  %v237 = vld [vmem:[%s236] sm:$0xff]
  %v238 = vld [vmem:[%s236 + $0x8] sm:$0xff]
  %v239 = vadd.f32 %v234, %v237
  %v240 = vadd.f32 %v235, %v238
  %v241 = vmul.f32 %v239, 0.23899427
  %v242 = vmul.f32 %v240, 0.23899427
  %v243 = vadd.f32 %v232, %v241
  %v244 = vadd.f32 %v233, %v242
  %v245 = vmul.f32 %v243, 0.52201146
  %v246 = vmul.f32 %v244, 0.52201146
  %v247 = vrot.slane %v243, 1
  %v248 = vrot.slane %v244, 1
  %v249 = vsel %vm34, %v247, %v248
  %v250 = vsel %vm34, %v248, %v247
  %v251 = vmul.f32 %v249, %v13
  %v252 = vmul.f32 %v250, %v14
  %v253 = vadd.f32 %v245, %v251
  %v254 = vadd.f32 %v246, %v252
  %v255 = vrot.slane %v243, 7
  %v256 = vrot.slane %v244, 7
  %v257 = vsel %vm43, %v255, %v256
  %v258 = vsel %vm43, %v256, %v255
  %v259 = vmul.f32 %v258, %v17
  %v260 = vmul.f32 %v257, %v18
  %v261 = vadd.f32 %v253, %v259
  %v262 = vadd.f32 %v254, %v260
  %s263 = scalar_lea.vmem %s1, 80
  %264 = vst.msk [vmem:[%s263] sm:$0xff] %vm50, %v261
  %265 = vst.msk [vmem:[%s263 + $0x8] sm:$0xff] %vm50, %v262
  %v266 = vld [vmem:[%s236] sm:$0xff]
  %v267 = vld [vmem:[%s236 + $0x8] sm:$0xff]
  %v268 = vmul.f32 %v266, 0.52201146
  %v269 = vmul.f32 %v267, 0.52201146
  %v270 = vld [vmem:[%s200] sm:$0xff]
  %v271 = vld [vmem:[%s200 + $0x8] sm:$0xff]
  %s272 = scalar_lea.vmem %s0, 112
  %v273 = vld [vmem:[%s272] sm:$0xff]
  %v274 = vld [vmem:[%s272 + $0x8] sm:$0xff]
  %v275 = vadd.f32 %v270, %v273
  %v276 = vadd.f32 %v271, %v274
  %v277 = vmul.f32 %v275, 0.23899427
  %v278 = vmul.f32 %v276, 0.23899427
  %v279 = vadd.f32 %v268, %v277
  %v280 = vadd.f32 %v269, %v278
  %v281 = vmul.f32 %v279, 0.52201146
  %v282 = vmul.f32 %v280, 0.52201146
  %v283 = vrot.slane %v279, 1
  %v284 = vrot.slane %v280, 1
  %v285 = vsel %vm34, %v283, %v284
  %v286 = vsel %vm34, %v284, %v283
  %v287 = vmul.f32 %v285, %v13
  %v288 = vmul.f32 %v286, %v14
  %v289 = vadd.f32 %v281, %v287
  %v290 = vadd.f32 %v282, %v288
  %v291 = vrot.slane %v279, 7
  %v292 = vrot.slane %v280, 7
  %v293 = vsel %vm43, %v291, %v292
  %v294 = vsel %vm43, %v292, %v291
  %v295 = vmul.f32 %v294, %v17
  %v296 = vmul.f32 %v293, %v18
  %v297 = vadd.f32 %v289, %v295
  %v298 = vadd.f32 %v290, %v296
  %s299 = scalar_lea.vmem %s1, 96
  %300 = vst.msk [vmem:[%s299] sm:$0xff] %vm50, %v297
  %301 = vst.msk [vmem:[%s299 + $0x8] sm:$0xff] %vm50, %v298
  %v302 = vld [vmem:[%s272] sm:$0xff]
  %v303 = vld [vmem:[%s272 + $0x8] sm:$0xff]
  %v304 = vmul.f32 %v302, 0.52201146
  %v305 = vmul.f32 %v303, 0.52201146
  %v306 = vld [vmem:[%s236] sm:$0xff]
  %v307 = vld [vmem:[%s236 + $0x8] sm:$0xff]
  %s308 = scalar_lea.vmem %s0, 128
  %v309 = vld [vmem:[%s308] sm:$0xff]
  %v310 = vld [vmem:[%s308 + $0x8] sm:$0xff]
  %v311 = vadd.f32 %v306, %v309
  %v312 = vadd.f32 %v307, %v310
  %v313 = vmul.f32 %v311, 0.23899427
  %v314 = vmul.f32 %v312, 0.23899427
  %v315 = vadd.f32 %v304, %v313
  %v316 = vadd.f32 %v305, %v314
  %v317 = vmul.f32 %v315, 0.52201146
  %v318 = vmul.f32 %v316, 0.52201146
  %v319 = vrot.slane %v315, 1
  %v320 = vrot.slane %v316, 1
  %v321 = vsel %vm34, %v319, %v320
  %v322 = vsel %vm34, %v320, %v319
  %v323 = vmul.f32 %v321, %v13
  %v324 = vmul.f32 %v322, %v14
  %v325 = vadd.f32 %v317, %v323
  %v326 = vadd.f32 %v318, %v324
  %v327 = vrot.slane %v315, 7
  %v328 = vrot.slane %v316, 7
  %v329 = vsel %vm43, %v327, %v328
  %v330 = vsel %vm43, %v328, %v327
  %v331 = vmul.f32 %v330, %v17
  %v332 = vmul.f32 %v329, %v18
  %v333 = vadd.f32 %v325, %v331
  %v334 = vadd.f32 %v326, %v332
  %s335 = scalar_lea.vmem %s1, 112
  %336 = vst.msk [vmem:[%s335] sm:$0xff] %vm50, %v333
  %337 = vst.msk [vmem:[%s335 + $0x8] sm:$0xff] %vm50, %v334
  %v338 = vld [vmem:[%s308] sm:$0xff]
  %v339 = vld [vmem:[%s308 + $0x8] sm:$0xff]
  %v340 = vmul.f32 %v338, 0.52201146
  %v341 = vmul.f32 %v339, 0.52201146
  %v342 = vld [vmem:[%s272] sm:$0xff]
  %v343 = vld [vmem:[%s272 + $0x8] sm:$0xff]
  %s344 = scalar_lea.vmem %s0, 144
  %v345 = vld [vmem:[%s344] sm:$0xff]
  %v346 = vld [vmem:[%s344 + $0x8] sm:$0xff]
  %v347 = vadd.f32 %v342, %v345
  %v348 = vadd.f32 %v343, %v346
  %v349 = vmul.f32 %v347, 0.23899427
  %v350 = vmul.f32 %v348, 0.23899427
  %v351 = vadd.f32 %v340, %v349
  %v352 = vadd.f32 %v341, %v350
  %v353 = vmul.f32 %v351, 0.52201146
  %v354 = vmul.f32 %v352, 0.52201146
  %v355 = vrot.slane %v351, 1
  %v356 = vrot.slane %v352, 1
  %v357 = vsel %vm34, %v355, %v356
  %v358 = vsel %vm34, %v356, %v355
  %v359 = vmul.f32 %v357, %v13
  %v360 = vmul.f32 %v358, %v14
  %v361 = vadd.f32 %v353, %v359
  %v362 = vadd.f32 %v354, %v360
  %v363 = vrot.slane %v351, 7
  %v364 = vrot.slane %v352, 7
  %v365 = vsel %vm43, %v363, %v364
  %v366 = vsel %vm43, %v364, %v363
  %v367 = vmul.f32 %v366, %v17
  %v368 = vmul.f32 %v365, %v18
  %v369 = vadd.f32 %v361, %v367
  %v370 = vadd.f32 %v362, %v368
  %s371 = scalar_lea.vmem %s1, 128
  %372 = vst.msk [vmem:[%s371] sm:$0xff] %vm50, %v369
  %373 = vst.msk [vmem:[%s371 + $0x8] sm:$0xff] %vm50, %v370
  %v374 = vld [vmem:[%s344] sm:$0xff]
  %v375 = vld [vmem:[%s344 + $0x8] sm:$0xff]
  %v376 = vmul.f32 %v374, 0.52201146
  %v377 = vmul.f32 %v375, 0.52201146
  %v378 = vld [vmem:[%s308] sm:$0xff]
  %v379 = vld [vmem:[%s308 + $0x8] sm:$0xff]
  %s380 = scalar_lea.vmem %s0, 160
  %v381 = vld [vmem:[%s380] sm:$0xff]
  %v382 = vld [vmem:[%s380 + $0x8] sm:$0xff]
  %v383 = vadd.f32 %v378, %v381
  %v384 = vadd.f32 %v379, %v382
  %v385 = vmul.f32 %v383, 0.23899427
  %v386 = vmul.f32 %v384, 0.23899427
  %v387 = vadd.f32 %v376, %v385
  %v388 = vadd.f32 %v377, %v386
  %v389 = vmul.f32 %v387, 0.52201146
  %v390 = vmul.f32 %v388, 0.52201146
  %v391 = vrot.slane %v387, 1
  %v392 = vrot.slane %v388, 1
  %v393 = vsel %vm34, %v391, %v392
  %v394 = vsel %vm34, %v392, %v391
  %v395 = vmul.f32 %v393, %v13
  %v396 = vmul.f32 %v394, %v14
  %v397 = vadd.f32 %v389, %v395
  %v398 = vadd.f32 %v390, %v396
  %v399 = vrot.slane %v387, 7
  %v400 = vrot.slane %v388, 7
  %v401 = vsel %vm43, %v399, %v400
  %v402 = vsel %vm43, %v400, %v399
  %v403 = vmul.f32 %v402, %v17
  %v404 = vmul.f32 %v401, %v18
  %v405 = vadd.f32 %v397, %v403
  %v406 = vadd.f32 %v398, %v404
  %s407 = scalar_lea.vmem %s1, 144
  %408 = vst.msk [vmem:[%s407] sm:$0xff] %vm50, %v405
  %409 = vst.msk [vmem:[%s407 + $0x8] sm:$0xff] %vm50, %v406
  %v410 = vld [vmem:[%s380] sm:$0xff]
  %v411 = vld [vmem:[%s380 + $0x8] sm:$0xff]
  %v412 = vmul.f32 %v410, 0.52201146
  %v413 = vmul.f32 %v411, 0.52201146
  %v414 = vld [vmem:[%s344] sm:$0xff]
  %v415 = vld [vmem:[%s344 + $0x8] sm:$0xff]
  %s416 = scalar_lea.vmem %s0, 176
  %v417 = vld [vmem:[%s416] sm:$0xff]
  %v418 = vld [vmem:[%s416 + $0x8] sm:$0xff]
  %v419 = vadd.f32 %v414, %v417
  %v420 = vadd.f32 %v415, %v418
  %v421 = vmul.f32 %v419, 0.23899427
  %v422 = vmul.f32 %v420, 0.23899427
  %v423 = vadd.f32 %v412, %v421
  %v424 = vadd.f32 %v413, %v422
  %v425 = vmul.f32 %v423, 0.52201146
  %v426 = vmul.f32 %v424, 0.52201146
  %v427 = vrot.slane %v423, 1
  %v428 = vrot.slane %v424, 1
  %v429 = vsel %vm34, %v427, %v428
  %v430 = vsel %vm34, %v428, %v427
  %v431 = vmul.f32 %v429, %v13
  %v432 = vmul.f32 %v430, %v14
  %v433 = vadd.f32 %v425, %v431
  %v434 = vadd.f32 %v426, %v432
  %v435 = vrot.slane %v423, 7
  %v436 = vrot.slane %v424, 7
  %v437 = vsel %vm43, %v435, %v436
  %v438 = vsel %vm43, %v436, %v435
  %v439 = vmul.f32 %v438, %v17
  %v440 = vmul.f32 %v437, %v18
  %v441 = vadd.f32 %v433, %v439
  %v442 = vadd.f32 %v434, %v440
  %s443 = scalar_lea.vmem %s1, 160
  %444 = vst.msk [vmem:[%s443] sm:$0xff] %vm50, %v441
  %445 = vst.msk [vmem:[%s443 + $0x8] sm:$0xff] %vm50, %v442
  %v446 = vld [vmem:[%s416] sm:$0xff]
  %v447 = vld [vmem:[%s416 + $0x8] sm:$0xff]
  %v448 = vmul.f32 %v446, 0.52201146
  %v449 = vmul.f32 %v447, 0.52201146
  %v450 = vld [vmem:[%s380] sm:$0xff]
  %v451 = vld [vmem:[%s380 + $0x8] sm:$0xff]
  %s452 = scalar_lea.vmem %s0, 192
  %v453 = vld [vmem:[%s452] sm:$0xff]
  %v454 = vld [vmem:[%s452 + $0x8] sm:$0xff]
  %v455 = vadd.f32 %v450, %v453
  %v456 = vadd.f32 %v451, %v454
  %v457 = vmul.f32 %v455, 0.23899427
  %v458 = vmul.f32 %v456, 0.23899427
  %v459 = vadd.f32 %v448, %v457
  %v460 = vadd.f32 %v449, %v458
  %v461 = vmul.f32 %v459, 0.52201146
  %v462 = vmul.f32 %v460, 0.52201146
  %v463 = vrot.slane %v459, 1
  %v464 = vrot.slane %v460, 1
  %v465 = vsel %vm34, %v463, %v464
  %v466 = vsel %vm34, %v464, %v463
  %v467 = vmul.f32 %v465, %v13
  %v468 = vmul.f32 %v466, %v14
  %v469 = vadd.f32 %v461, %v467
  %v470 = vadd.f32 %v462, %v468
  %v471 = vrot.slane %v459, 7
  %v472 = vrot.slane %v460, 7
  %v473 = vsel %vm43, %v471, %v472
  %v474 = vsel %vm43, %v472, %v471
  %v475 = vmul.f32 %v474, %v17
  %v476 = vmul.f32 %v473, %v18
  %v477 = vadd.f32 %v469, %v475
  %v478 = vadd.f32 %v470, %v476
  %s479 = scalar_lea.vmem %s1, 176
  %480 = vst.msk [vmem:[%s479] sm:$0xff] %vm50, %v477
  %481 = vst.msk [vmem:[%s479 + $0x8] sm:$0xff] %vm50, %v478
  %v482 = vld [vmem:[%s452] sm:$0xff]
  %v483 = vld [vmem:[%s452 + $0x8] sm:$0xff]
  %v484 = vmul.f32 %v482, 0.52201146
  %v485 = vmul.f32 %v483, 0.52201146
  %v486 = vld [vmem:[%s416] sm:$0xff]
  %v487 = vld [vmem:[%s416 + $0x8] sm:$0xff]
  %s488 = scalar_lea.vmem %s0, 208
  %v489 = vld [vmem:[%s488] sm:$0xff]
  %v490 = vld [vmem:[%s488 + $0x8] sm:$0xff]
  %v491 = vadd.f32 %v486, %v489
  %v492 = vadd.f32 %v487, %v490
  %v493 = vmul.f32 %v491, 0.23899427
  %v494 = vmul.f32 %v492, 0.23899427
  %v495 = vadd.f32 %v484, %v493
  %v496 = vadd.f32 %v485, %v494
  %v497 = vmul.f32 %v495, 0.52201146
  %v498 = vmul.f32 %v496, 0.52201146
  %v499 = vrot.slane %v495, 1
  %v500 = vrot.slane %v496, 1
  %v501 = vsel %vm34, %v499, %v500
  %v502 = vsel %vm34, %v500, %v499
  %v503 = vmul.f32 %v501, %v13
  %v504 = vmul.f32 %v502, %v14
  %v505 = vadd.f32 %v497, %v503
  %v506 = vadd.f32 %v498, %v504
  %v507 = vrot.slane %v495, 7
  %v508 = vrot.slane %v496, 7
  %v509 = vsel %vm43, %v507, %v508
  %v510 = vsel %vm43, %v508, %v507
  %v511 = vmul.f32 %v510, %v17
  %v512 = vmul.f32 %v509, %v18
  %v513 = vadd.f32 %v505, %v511
  %v514 = vadd.f32 %v506, %v512
  %s515 = scalar_lea.vmem %s1, 192
  %516 = vst.msk [vmem:[%s515] sm:$0xff] %vm50, %v513
  %517 = vst.msk [vmem:[%s515 + $0x8] sm:$0xff] %vm50, %v514
  %v518 = vld [vmem:[%s488] sm:$0xff]
  %v519 = vld [vmem:[%s488 + $0x8] sm:$0xff]
  %v520 = vmul.f32 %v518, 0.52201146
  %v521 = vmul.f32 %v519, 0.52201146
  %v522 = vld [vmem:[%s452] sm:$0xff]
  %v523 = vld [vmem:[%s452 + $0x8] sm:$0xff]
  %v524 = vld [vmem:[%s53] sm:$0xff]
  %v525 = vld [vmem:[%s53 + $0x8] sm:$0xff]
  %v526 = vadd.f32 %v522, %v524
  %v527 = vadd.f32 %v523, %v525
  %v528 = vmul.f32 %v526, 0.23899427
  %v529 = vmul.f32 %v527, 0.23899427
  %v530 = vadd.f32 %v520, %v528
  %v531 = vadd.f32 %v521, %v529
  %v532 = vmul.f32 %v530, 0.52201146
  %v533 = vmul.f32 %v531, 0.52201146
  %v534 = vrot.slane %v530, 1
  %v535 = vrot.slane %v531, 1
  %v536 = vsel %vm34, %v534, %v535
  %v537 = vsel %vm34, %v535, %v534
  %v538 = vmul.f32 %v536, %v13
  %v539 = vmul.f32 %v537, %v14
  %v540 = vadd.f32 %v532, %v538
  %v541 = vadd.f32 %v533, %v539
  %v542 = vrot.slane %v530, 7
  %v543 = vrot.slane %v531, 7
  %v544 = vsel %vm43, %v542, %v543
  %v545 = vsel %vm43, %v543, %v542
  %v546 = vmul.f32 %v545, %v17
  %v547 = vmul.f32 %v544, %v18
  %v548 = vadd.f32 %v540, %v546
  %v549 = vadd.f32 %v541, %v547
  %s550 = scalar_lea.vmem %s1, 208
  %551 = vst.msk [vmem:[%s550] sm:$0xff] %vm50, %v548
  %552 = vst.msk [vmem:[%s550 + $0x8] sm:$0xff] %vm50, %v549
  %v553 = vld [vmem:[%s53] sm:$0xff]
  %v554 = vld [vmem:[%s53 + $0x8] sm:$0xff]
  %v555 = vmul.f32 %v553, 0.52201146
  %v556 = vmul.f32 %v554, 0.52201146
  %v557 = vld [vmem:[%s488] sm:$0xff]
  %v558 = vld [vmem:[%s488 + $0x8] sm:$0xff]
  %v559 = vld [vmem:[%s58] sm:$0xff]
  %v560 = vld [vmem:[%s58 + $0x8] sm:$0xff]
  %v561 = vadd.f32 %v557, %v559
  %v562 = vadd.f32 %v558, %v560
  %v563 = vmul.f32 %v561, 0.23899427
  %v564 = vmul.f32 %v562, 0.23899427
  %v565 = vadd.f32 %v555, %v563
  %v566 = vadd.f32 %v556, %v564
  %v567 = vmul.f32 %v565, 0.52201146
  %v568 = vmul.f32 %v566, 0.52201146
  %v569 = vrot.slane %v565, 1
  %v570 = vrot.slane %v566, 1
  %v571 = vsel %vm34, %v569, %v570
  %v572 = vsel %vm34, %v570, %v569
  %v573 = vmul.f32 %v571, %v13
  %v574 = vmul.f32 %v572, %v14
  %v575 = vadd.f32 %v567, %v573
  %v576 = vadd.f32 %v568, %v574
  %v577 = vrot.slane %v565, 7
  %v578 = vrot.slane %v566, 7
  %v579 = vsel %vm43, %v577, %v578
  %v580 = vsel %vm43, %v578, %v577
  %v581 = vmul.f32 %v580, %v17
  %v582 = vmul.f32 %v579, %v18
  %v583 = vadd.f32 %v575, %v581
  %v584 = vadd.f32 %v576, %v582
  %s585 = scalar_lea.vmem %s1, 224
  %586 = vst.msk [vmem:[%s585] sm:$0xff] %vm50, %v583
  %587 = vst.msk [vmem:[%s585 + $0x8] sm:$0xff] %vm50, %v584
  // Predicated region
  $region6: #{tpu_custom_call.1} parent=0 // pred_check
    _
  $region7: #{tpu_custom_call.1} parent=0 // pred_check_branch
    %589 = sbr.rel (0) target = $region9
  $region8: #{tpu_custom_call.1} parent=0 // pred_region
    _
  $region9: #{tpu_custom_call.1} parent=0 // pred_fallthru
    _
  // Predicated region
  $region10: #{tpu_custom_call.1} parent=0 // pred_check
    _
  $region11: #{tpu_custom_call.1} parent=0 // pred_check_branch
    %591 = sbr.rel (0) target = $region13
  $region12: #{tpu_custom_call.1} parent=0 // pred_region
    _
  $region13: #{tpu_custom_call.1} parent=0 // pred_fallthru
    _

</llo_original>
